<compile_context>
chip_gen: v7x
topology: tpu7x:2x2x1
jax: 0.10.0
libtpu: 0.0.40
codegen_flags: <defaults>
</compile_context>

<pallas_src>
import functools

import jax
import jax.numpy as jnp
import numpy as np
from jax.experimental import pallas as pl
from jax.experimental.pallas import tpu as pltpu


def _round_up(x, m):
    return (x + m - 1) // m * m


# ---------------------------------------------------------------------------
# Fused Pallas kernel: 6 hidden PBC convs + final conv + Fourier multiply
# ---------------------------------------------------------------------------
def fused_forward_kernel(*refs, n_layers, shift):
    """refs = (x, [Wcat_i, b_i]*n_layers, ft, out).

    x    : (C0_pad, W)          input block, lane = site*bc + batch_local
    Wcat : (rows_i, 2*C_in_pad) both conv taps stacked along K (bf16 or f32)
    b    : (rows_i, 1)          f32 bias
    ft   : (n_orb*N, W)         precomputed cos/sin(k*pos) table (f32)
    out  : (n_orb*N, W)         f32

    `shift` = W - bc: lane roll-right by W-bc == roll-left by bc lanes ==
    advance every lane by one site with the per-batch periodic wraparound
    (exact because the W lanes of one block cover all L sites of its batch
    columns).
    """
    x_ref = refs[0]
    w_refs = refs[1:1 + 2 * n_layers]
    ft_ref = refs[1 + 2 * n_layers]
    out_ref = refs[2 + 2 * n_layers]

    x = x_ref[...]                                        # (C0_pad, W) f32
    for i in range(n_layers):
        w = w_refs[2 * i][...]                            # (rows, 2*C_in_pad)
        b = w_refs[2 * i + 1][...]                        # (rows, 1) f32
        xr = pltpu.roll(x, shift, axis=1)                 # site -> site+1 (PBC)
        xcat = jnp.concatenate([x, xr], axis=0)           # (2*C_in_pad, W), 8-aligned
        y = jnp.dot(w, xcat.astype(w.dtype),
                    preferred_element_type=jnp.float32) + b
        if i < n_layers - 1:                              # LeakyReLU on hidden convs only
            y = jnp.where(y >= 0.0, y, 0.01 * y)
        x = y
    # Final-layer rows are already repeated per (orbital, n) pair, so applying
    # the Fourier factor is a pure elementwise multiply + one dense store.
    out_ref[...] = ft_ref[...] * x


# ---------------------------------------------------------------------------
# Wrapper
# ---------------------------------------------------------------------------
def ti_wf_1d_forward(x, params, L, n_orb, N, compute_dtype=jnp.bfloat16):
    """Pallas implementation of TI_wf_1d.forward (use_ft=True path)."""
    batch = x.shape[0]
    C0 = 2 * n_orb
    nh = N // 2
    LANE = 128

    # --- choose the per-grid-step batch chunk so lane blocks are 128-dense ---
    bc = 1 if L >= LANE else max(1, LANE // L)      # batch columns per grid step
    if (L * bc) % LANE != 0:
        bc = batch                                  # fallback: single full-array block
    bc = max(bc, 1)
    W = L * bc                                      # lanes per grid step (=128 here)
    n_chunks = -(-batch // bc)
    batch_pad = n_chunks * bc
    total_lanes = n_chunks * W

    # torch glue: transpose(2,3)+reshape == drop the singleton spatial dim
    y = jnp.transpose(x, (0, 1, 3, 2)).reshape(batch, C0, L).astype(jnp.float32)
    y = jnp.pad(y, ((0, batch_pad - batch), (0, 0), (0, 0)))
    # lane = site*bc + batch_local (site-major so the PBC roll is one lane roll)
    x0 = jnp.transpose(y.reshape(n_chunks, bc, C0, L), (2, 0, 3, 1))
    x0 = x0.reshape(C0, total_lanes)
    C0_pad = _round_up(C0, 8)
    x0 = jnp.pad(x0, ((0, C0_pad - C0), (0, 0)))

    # --- stack the two conv taps into one K-fused weight per layer -----------
    layers = list(params["conv"]) + [params["convfinal"]]
    n_layers = len(layers)
    wb_inputs = []
    layer_dims = []
    c_in = C0
    for li, (w, b) in enumerate(layers):
        c_out = w.shape[0]
        c_in_pad = _round_up(c_in, 8)
        wcat = jnp.zeros((c_out, 2 * c_in_pad), jnp.float32)
        wcat = wcat.at[:, :c_in].set(w[:, :, 0])
        wcat = wcat.at[:, c_in_pad:c_in_pad + c_in].set(w[:, :, 1])
        bvec = b.reshape(c_out, 1).astype(jnp.float32)
        if li == n_layers - 1:
            # Fold the per-orbital row-repeat into the final conv weight so the
            # Fourier multiply needs no in-kernel repeat / R-matmul.
            wcat = jnp.repeat(wcat, N, axis=0)          # (n_orb*N, 2*c_in_pad)
            bvec = jnp.repeat(bvec, N, axis=0)
            rows = c_out * N
        else:
            rows = _round_up(c_out, 8)                  # keep sublane tiles aligned
            wcat = jnp.pad(wcat, ((0, rows - c_out), (0, 0)))
            bvec = jnp.pad(bvec, ((0, rows - c_out), (0, 0)))
        wb_inputs += [wcat.astype(compute_dtype), bvec]
        layer_dims.append((rows, 2 * c_in_pad))
        c_in = c_out

    # --- Fourier table (batch-invariant) precomputed outside the kernel ------
    # NOTE: the torch forward evaluates self.k_layer(pseudo_input) and then
    # overwrites it with self.test_k, so the k-MLP is dead compute (omitted).
    # TODO(synk): self.test_k is never defined in the reference __init__;
    # it is a deterministic synthetic parameter here.
    k = (2.0 * np.pi / L) * params["test_k"].reshape(n_orb, nh)
    pos = params["pos_vec"].reshape(L).astype(jnp.float32)
    kr = k[:, :, None] * pos[None, None, :]                       # (n_orb, nh, L)
    ft = jnp.concatenate([jnp.cos(kr), jnp.sin(kr)], axis=1)      # (n_orb, N, L)
    ft = jnp.broadcast_to(ft[:, :, None, :, None], (n_orb, N, n_chunks, L, bc))
    ft = ft.reshape(n_orb * N, total_lanes).astype(jnp.float32)

    inputs = [x0] + wb_inputs + [ft]

    def const_spec(arr):
        nd = arr.ndim
        return pl.BlockSpec(arr.shape, lambda c, _nd=nd: (0,) * _nd)

    in_specs = ([pl.BlockSpec((C0_pad, W), lambda c: (0, c))]
                + [const_spec(a) for a in wb_inputs]
                + [pl.BlockSpec((n_orb * N, W), lambda c: (0, c))])
    out_specs = pl.BlockSpec((n_orb * N, W), lambda c: (0, c))

    # Advisory cost hint so XLA schedules this tiny, latency-bound call tightly.
    flops = sum(2 * r * kk * total_lanes for r, kk in layer_dims)
    flops += 4 * n_orb * N * total_lanes
    bytes_accessed = int(sum(int(np.prod(a.shape)) * a.dtype.itemsize for a in inputs))
    bytes_accessed += n_orb * N * total_lanes * 4
    cost = pl.CostEstimate(flops=int(flops), transcendentals=0,
                           bytes_accessed=int(bytes_accessed))

    kernel = functools.partial(fused_forward_kernel, n_layers=n_layers,
                               shift=W - bc)
    out = pl.pallas_call(
        kernel,
        out_shape=jax.ShapeDtypeStruct((n_orb * N, total_lanes), jnp.float32),
        grid=(n_chunks,),
        in_specs=in_specs,
        out_specs=out_specs,
        compiler_params=pltpu.CompilerParams(dimension_semantics=("parallel",)),
        cost_estimate=cost,
    )(*inputs)

    # out[o*N + n, chunk*W + l*bc + b_local]  ->  (batch, n_orb, N, L)
    out = out.reshape(n_orb, N, n_chunks, L, bc)
    out = jnp.transpose(out, (2, 4, 0, 1, 3)).reshape(batch_pad, n_orb, N, L)
    return out[:batch]


# ---------------------------------------------------------------------------
# Pure-JAX reference (mirrors the torch math) for correctness checks
# ---------------------------------------------------------------------------
def reference_forward(x, params, L, n_orb, N, compute_dtype=jnp.float32):
    batch = x.shape[0]
    y = jnp.transpose(x, (0, 1, 3, 2)).reshape(batch, 2 * n_orb, L).astype(jnp.float32)
    hp = jax.lax.Precision.HIGHEST if compute_dtype == jnp.float32 else None

    def conv_pbc_ref(y, w, b):
        yc = y.astype(compute_dtype)
        wc = w.astype(compute_dtype)
        yp = jnp.concatenate([yc, yc[:, :, :1]], axis=2)   # PBC pad by 1
        return (jnp.einsum('oc,bcl->bol', wc[:, :, 0], yp[:, :, :L],
                           precision=hp, preferred_element_type=jnp.float32)
                + jnp.einsum('oc,bcl->bol', wc[:, :, 1], yp[:, :, 1:],
                             precision=hp, preferred_element_type=jnp.float32)
                + b[None, :, None].astype(jnp.float32))

    for (w, b) in params["conv"]:
        y = conv_pbc_ref(y, w, b)
        y = jnp.where(y >= 0.0, y, 0.01 * y)
    wf, bf = params["convfinal"]
    y = conv_pbc_ref(y, wf, bf)                            # (batch, n_orb, L)

    k = (2.0 * np.pi / L) * params["test_k"]               # (1, n_orb*N//2)
    kr = (k * params["pos_vec"].reshape(L, 1)).reshape(L, n_orb, N // 2)
    kr = jnp.transpose(kr, (1, 0, 2))                      # (n_orb, L, N//2)
    FT = jnp.concatenate([jnp.cos(kr), jnp.sin(kr)], axis=2)[:, :, :N]
    yf = y[:, :, :, None] * FT[None]                       # (batch, n_orb, L, N)
    return jnp.transpose(yf, (0, 1, 3, 2))                 # (batch, n_orb, N, L)


# ---------------------------------------------------------------------------
# Deterministic parameter construction + run
# ---------------------------------------------------------------------------
def xavier_normal(key, shape, fan_in, fan_out):
    std = float(np.sqrt(2.0 / (fan_in + fan_out)))
    return std * jax.random.normal(key, shape, dtype=jnp.float32)


if __name__ == "__main__":
    L, n_orb, N, batch = 16, 2, 4, 2
    channels = [10, 30, 50, 100, 50, 30]

    key = jax.random.PRNGKey(0)
    keys = iter(jax.random.split(key, 32))

    conv_params = []
    c_in = 2 * n_orb
    for c_out in channels:
        w = xavier_normal(next(keys), (c_out, c_in, 2), c_in * 2, c_out * 2)
        b = 0.1 * jax.random.normal(next(keys), (c_out,), dtype=jnp.float32)
        conv_params.append((w, b))
        c_in = c_out
    wf = xavier_normal(next(keys), (n_orb, c_in, 2), c_in * 2, n_orb * 2)
    bf = 0.1 * jax.random.normal(next(keys), (n_orb,), dtype=jnp.float32)
    test_k = jax.random.normal(next(keys), (1, n_orb * (N // 2)), dtype=jnp.float32)

    params = {
        "conv": conv_params,
        "convfinal": (wf, bf),
        "test_k": test_k,
        "pos_vec": jnp.arange(L, dtype=jnp.float32),
    }

    x = jax.random.normal(next(keys), (batch, 2 * n_orb, 1, L), dtype=jnp.float32)

    # 1) f32-operand path, checked against the high-precision reference.
    fwd_f32 = jax.jit(functools.partial(ti_wf_1d_forward, L=L, n_orb=n_orb, N=N,
                                        compute_dtype=jnp.float32))
    out_f32 = jax.block_until_ready(fwd_f32(x, params))
    ref_f32 = jax.block_until_ready(reference_forward(x, params, L, n_orb, N))
    assert out_f32.shape == (batch, n_orb, N, L), out_f32.shape
    np.testing.assert_allclose(np.asarray(out_f32), np.asarray(ref_f32),
                               rtol=1e-2, atol=1e-3)

    # 2) bf16-operand / f32-accumulate path (v5e/v6e-native MXU), checked against
    #    a reference that applies the same operand rounding.
    fwd_bf16 = jax.jit(functools.partial(ti_wf_1d_forward, L=L, n_orb=n_orb, N=N,
                                         compute_dtype=jnp.bfloat16))
    out_bf16 = jax.block_until_ready(fwd_bf16(x, params))
    ref_bf16 = jax.block_until_ready(reference_forward(x, params, L, n_orb, N,
                                                       compute_dtype=jnp.bfloat16))
    assert out_bf16.shape == (batch, n_orb, N, L), out_bf16.shape
    np.testing.assert_allclose(np.asarray(out_bf16), np.asarray(ref_bf16),
                               rtol=2e-2, atol=2e-3)

    print("KERNEL_OK")
</pallas_src>

<mosaic_0001>
module attributes {stable_mosaic.version = 11 : i64} {
  func.func @fused_forward_kernel(%arg0: i32, %arg1: memref<8x128xf32, #tpu.memory_space<vmem>>, %arg2: memref<16x16xf32, #tpu.memory_space<vmem>>, %arg3: memref<16x1xf32, #tpu.memory_space<vmem>>, %arg4: memref<32x32xf32, #tpu.memory_space<vmem>>, %arg5: memref<32x1xf32, #tpu.memory_space<vmem>>, %arg6: memref<56x64xf32, #tpu.memory_space<vmem>>, %arg7: memref<56x1xf32, #tpu.memory_space<vmem>>, %arg8: memref<104x112xf32, #tpu.memory_space<vmem>>, %arg9: memref<104x1xf32, #tpu.memory_space<vmem>>, %arg10: memref<56x208xf32, #tpu.memory_space<vmem>>, %arg11: memref<56x1xf32, #tpu.memory_space<vmem>>, %arg12: memref<32x112xf32, #tpu.memory_space<vmem>>, %arg13: memref<32x1xf32, #tpu.memory_space<vmem>>, %arg14: memref<8x64xf32, #tpu.memory_space<vmem>>, %arg15: memref<8x1xf32, #tpu.memory_space<vmem>>, %arg16: memref<8x128xf32, #tpu.memory_space<vmem>>, %arg17: memref<8x128xf32, #tpu.memory_space<vmem>>) attributes {dimension_semantics = [#tpu.dimension_semantics<parallel>], iteration_bounds = array<i64: 1>, scalar_prefetch = 0 : i64, scratch_operands = 0 : i64, tpu.core_type = #tpu.core_type<tc>, window_params = [{transform_indices = @transform_0, window_bounds = array<i64: 8, 128>}, {pipeline_mode = #tpu.pipeline_mode<synchronous>, transform_indices = @transform_1, window_bounds = array<i64: 16, 16>}, {pipeline_mode = #tpu.pipeline_mode<synchronous>, transform_indices = @transform_2, window_bounds = array<i64: 16, 1>}, {pipeline_mode = #tpu.pipeline_mode<synchronous>, transform_indices = @transform_3, window_bounds = array<i64: 32, 32>}, {pipeline_mode = #tpu.pipeline_mode<synchronous>, transform_indices = @transform_4, window_bounds = array<i64: 32, 1>}, {pipeline_mode = #tpu.pipeline_mode<synchronous>, transform_indices = @transform_5, window_bounds = array<i64: 56, 64>}, {pipeline_mode = #tpu.pipeline_mode<synchronous>, transform_indices = @transform_6, window_bounds = array<i64: 56, 1>}, {pipeline_mode = #tpu.pipeline_mode<synchronous>, transform_indices = @transform_7, window_bounds = array<i64: 104, 112>}, {pipeline_mode = #tpu.pipeline_mode<synchronous>, transform_indices = @transform_8, window_bounds = array<i64: 104, 1>}, {pipeline_mode = #tpu.pipeline_mode<synchronous>, transform_indices = @transform_9, window_bounds = array<i64: 56, 208>}, {pipeline_mode = #tpu.pipeline_mode<synchronous>, transform_indices = @transform_10, window_bounds = array<i64: 56, 1>}, {pipeline_mode = #tpu.pipeline_mode<synchronous>, transform_indices = @transform_11, window_bounds = array<i64: 32, 112>}, {pipeline_mode = #tpu.pipeline_mode<synchronous>, transform_indices = @transform_12, window_bounds = array<i64: 32, 1>}, {pipeline_mode = #tpu.pipeline_mode<synchronous>, transform_indices = @transform_13, window_bounds = array<i64: 8, 64>}, {pipeline_mode = #tpu.pipeline_mode<synchronous>, transform_indices = @transform_14, window_bounds = array<i64: 8, 1>}, {transform_indices = @transform_15, window_bounds = array<i64: 8, 128>}, {transform_indices = @transform_16, window_bounds = array<i64: 8, 128>}]} {
    %c0 = arith.constant 0 : index
    %c0_0 = arith.constant 0 : index
    %0 = vector.load %arg1[%c0, %c0_0] : memref<8x128xf32, #tpu.memory_space<vmem>>, vector<8x128xf32>
    %c0_1 = arith.constant 0 : index
    %c0_2 = arith.constant 0 : index
    %1 = vector.load %arg2[%c0_1, %c0_2] : memref<16x16xf32, #tpu.memory_space<vmem>>, vector<16x16xf32>
    %c0_3 = arith.constant 0 : index
    %c0_4 = arith.constant 0 : index
    %2 = vector.load %arg3[%c0_3, %c0_4] : memref<16x1xf32, #tpu.memory_space<vmem>>, vector<16x1xf32>
    %c120_i32 = arith.constant 120 : i32
    %3 = tpu.dynamic_rotate %0 by %c120_i32 dim 1 : vector<8x128xf32>, i32 -> vector<8x128xf32>
    %4 = tpu.concatenate %0, %3 in 0 : vector<8x128xf32>, vector<8x128xf32> -> vector<16x128xf32>
    %cst = arith.constant dense<0.000000e+00> : vector<16x128xf32>
    %5 = tpu.matmul %1, %4, %cst {dimension_numbers = #tpu.dot_dimension_numbers<[1], [0], [0], [1], [0, 0, 1, 1], [], []>} : vector<16x16xf32>, vector<16x128xf32>, vector<16x128xf32> -> vector<16x128xf32>
    %6 = vector.broadcast %2 : vector<16x1xf32> to vector<16x128xf32>
    %7 = arith.addf %5, %6 : vector<16x128xf32>
    %cst_5 = arith.constant 0.000000e+00 : f32
    %8 = vector.broadcast %cst_5 : f32 to vector<16x128xf32>
    %9 = arith.cmpf oge, %7, %8 : vector<16x128xf32>
    %cst_6 = arith.constant 0.00999999977 : f32
    %10 = vector.broadcast %cst_6 : f32 to vector<16x128xf32>
    %11 = arith.mulf %10, %7 : vector<16x128xf32>
    %12 = arith.select %9, %7, %11 : vector<16x128xi1>, vector<16x128xf32>
    %c0_7 = arith.constant 0 : index
    %c0_8 = arith.constant 0 : index
    %13 = vector.load %arg4[%c0_7, %c0_8] : memref<32x32xf32, #tpu.memory_space<vmem>>, vector<32x32xf32>
    %c0_9 = arith.constant 0 : index
    %c0_10 = arith.constant 0 : index
    %14 = vector.load %arg5[%c0_9, %c0_10] : memref<32x1xf32, #tpu.memory_space<vmem>>, vector<32x1xf32>
    %c120_i32_11 = arith.constant 120 : i32
    %15 = tpu.dynamic_rotate %12 by %c120_i32_11 dim 1 : vector<16x128xf32>, i32 -> vector<16x128xf32>
    %16 = tpu.concatenate %12, %15 in 0 : vector<16x128xf32>, vector<16x128xf32> -> vector<32x128xf32>
    %cst_12 = arith.constant dense<0.000000e+00> : vector<32x128xf32>
    %17 = tpu.matmul %13, %16, %cst_12 {dimension_numbers = #tpu.dot_dimension_numbers<[1], [0], [0], [1], [0, 0, 1, 1], [], []>} : vector<32x32xf32>, vector<32x128xf32>, vector<32x128xf32> -> vector<32x128xf32>
    %18 = vector.broadcast %14 : vector<32x1xf32> to vector<32x128xf32>
    %19 = arith.addf %17, %18 : vector<32x128xf32>
    %cst_13 = arith.constant 0.000000e+00 : f32
    %20 = vector.broadcast %cst_13 : f32 to vector<32x128xf32>
    %21 = arith.cmpf oge, %19, %20 : vector<32x128xf32>
    %cst_14 = arith.constant 0.00999999977 : f32
    %22 = vector.broadcast %cst_14 : f32 to vector<32x128xf32>
    %23 = arith.mulf %22, %19 : vector<32x128xf32>
    %24 = arith.select %21, %19, %23 : vector<32x128xi1>, vector<32x128xf32>
    %c0_15 = arith.constant 0 : index
    %c0_16 = arith.constant 0 : index
    %25 = vector.load %arg6[%c0_15, %c0_16] : memref<56x64xf32, #tpu.memory_space<vmem>>, vector<56x64xf32>
    %c0_17 = arith.constant 0 : index
    %c0_18 = arith.constant 0 : index
    %26 = vector.load %arg7[%c0_17, %c0_18] : memref<56x1xf32, #tpu.memory_space<vmem>>, vector<56x1xf32>
    %c120_i32_19 = arith.constant 120 : i32
    %27 = tpu.dynamic_rotate %24 by %c120_i32_19 dim 1 : vector<32x128xf32>, i32 -> vector<32x128xf32>
    %28 = tpu.concatenate %24, %27 in 0 : vector<32x128xf32>, vector<32x128xf32> -> vector<64x128xf32>
    %cst_20 = arith.constant dense<0.000000e+00> : vector<56x128xf32>
    %29 = tpu.matmul %25, %28, %cst_20 {dimension_numbers = #tpu.dot_dimension_numbers<[1], [0], [0], [1], [0, 0, 1, 1], [], []>} : vector<56x64xf32>, vector<64x128xf32>, vector<56x128xf32> -> vector<56x128xf32>
    %30 = vector.broadcast %26 : vector<56x1xf32> to vector<56x128xf32>
    %31 = arith.addf %29, %30 : vector<56x128xf32>
    %cst_21 = arith.constant 0.000000e+00 : f32
    %32 = vector.broadcast %cst_21 : f32 to vector<56x128xf32>
    %33 = arith.cmpf oge, %31, %32 : vector<56x128xf32>
    %cst_22 = arith.constant 0.00999999977 : f32
    %34 = vector.broadcast %cst_22 : f32 to vector<56x128xf32>
    %35 = arith.mulf %34, %31 : vector<56x128xf32>
    %36 = arith.select %33, %31, %35 : vector<56x128xi1>, vector<56x128xf32>
    %c0_23 = arith.constant 0 : index
    %c0_24 = arith.constant 0 : index
    %37 = vector.load %arg8[%c0_23, %c0_24] : memref<104x112xf32, #tpu.memory_space<vmem>>, vector<104x112xf32>
    %c0_25 = arith.constant 0 : index
    %c0_26 = arith.constant 0 : index
    %38 = vector.load %arg9[%c0_25, %c0_26] : memref<104x1xf32, #tpu.memory_space<vmem>>, vector<104x1xf32>
    %c120_i32_27 = arith.constant 120 : i32
    %39 = tpu.dynamic_rotate %36 by %c120_i32_27 dim 1 : vector<56x128xf32>, i32 -> vector<56x128xf32>
    %40 = tpu.concatenate %36, %39 in 0 : vector<56x128xf32>, vector<56x128xf32> -> vector<112x128xf32>
    %cst_28 = arith.constant dense<0.000000e+00> : vector<104x128xf32>
    %41 = tpu.matmul %37, %40, %cst_28 {dimension_numbers = #tpu.dot_dimension_numbers<[1], [0], [0], [1], [0, 0, 1, 1], [], []>} : vector<104x112xf32>, vector<112x128xf32>, vector<104x128xf32> -> vector<104x128xf32>
    %42 = vector.broadcast %38 : vector<104x1xf32> to vector<104x128xf32>
    %43 = arith.addf %41, %42 : vector<104x128xf32>
    %cst_29 = arith.constant 0.000000e+00 : f32
    %44 = vector.broadcast %cst_29 : f32 to vector<104x128xf32>
    %45 = arith.cmpf oge, %43, %44 : vector<104x128xf32>
    %cst_30 = arith.constant 0.00999999977 : f32
    %46 = vector.broadcast %cst_30 : f32 to vector<104x128xf32>
    %47 = arith.mulf %46, %43 : vector<104x128xf32>
    %48 = arith.select %45, %43, %47 : vector<104x128xi1>, vector<104x128xf32>
    %c0_31 = arith.constant 0 : index
    %c0_32 = arith.constant 0 : index
    %49 = vector.load %arg10[%c0_31, %c0_32] : memref<56x208xf32, #tpu.memory_space<vmem>>, vector<56x208xf32>
    %c0_33 = arith.constant 0 : index
    %c0_34 = arith.constant 0 : index
    %50 = vector.load %arg11[%c0_33, %c0_34] : memref<56x1xf32, #tpu.memory_space<vmem>>, vector<56x1xf32>
    %c120_i32_35 = arith.constant 120 : i32
    %51 = tpu.dynamic_rotate %48 by %c120_i32_35 dim 1 : vector<104x128xf32>, i32 -> vector<104x128xf32>
    %52 = tpu.concatenate %48, %51 in 0 : vector<104x128xf32>, vector<104x128xf32> -> vector<208x128xf32>
    %cst_36 = arith.constant dense<0.000000e+00> : vector<56x128xf32>
    %53 = tpu.matmul %49, %52, %cst_36 {dimension_numbers = #tpu.dot_dimension_numbers<[1], [0], [0], [1], [0, 0, 1, 1], [], []>} : vector<56x208xf32>, vector<208x128xf32>, vector<56x128xf32> -> vector<56x128xf32>
    %54 = vector.broadcast %50 : vector<56x1xf32> to vector<56x128xf32>
    %55 = arith.addf %53, %54 : vector<56x128xf32>
    %cst_37 = arith.constant 0.000000e+00 : f32
    %56 = vector.broadcast %cst_37 : f32 to vector<56x128xf32>
    %57 = arith.cmpf oge, %55, %56 : vector<56x128xf32>
    %cst_38 = arith.constant 0.00999999977 : f32
    %58 = vector.broadcast %cst_38 : f32 to vector<56x128xf32>
    %59 = arith.mulf %58, %55 : vector<56x128xf32>
    %60 = arith.select %57, %55, %59 : vector<56x128xi1>, vector<56x128xf32>
    %c0_39 = arith.constant 0 : index
    %c0_40 = arith.constant 0 : index
    %61 = vector.load %arg12[%c0_39, %c0_40] : memref<32x112xf32, #tpu.memory_space<vmem>>, vector<32x112xf32>
    %c0_41 = arith.constant 0 : index
    %c0_42 = arith.constant 0 : index
    %62 = vector.load %arg13[%c0_41, %c0_42] : memref<32x1xf32, #tpu.memory_space<vmem>>, vector<32x1xf32>
    %c120_i32_43 = arith.constant 120 : i32
    %63 = tpu.dynamic_rotate %60 by %c120_i32_43 dim 1 : vector<56x128xf32>, i32 -> vector<56x128xf32>
    %64 = tpu.concatenate %60, %63 in 0 : vector<56x128xf32>, vector<56x128xf32> -> vector<112x128xf32>
    %cst_44 = arith.constant dense<0.000000e+00> : vector<32x128xf32>
    %65 = tpu.matmul %61, %64, %cst_44 {dimension_numbers = #tpu.dot_dimension_numbers<[1], [0], [0], [1], [0, 0, 1, 1], [], []>} : vector<32x112xf32>, vector<112x128xf32>, vector<32x128xf32> -> vector<32x128xf32>
    %66 = vector.broadcast %62 : vector<32x1xf32> to vector<32x128xf32>
    %67 = arith.addf %65, %66 : vector<32x128xf32>
    %cst_45 = arith.constant 0.000000e+00 : f32
    %68 = vector.broadcast %cst_45 : f32 to vector<32x128xf32>
    %69 = arith.cmpf oge, %67, %68 : vector<32x128xf32>
    %cst_46 = arith.constant 0.00999999977 : f32
    %70 = vector.broadcast %cst_46 : f32 to vector<32x128xf32>
    %71 = arith.mulf %70, %67 : vector<32x128xf32>
    %72 = arith.select %69, %67, %71 : vector<32x128xi1>, vector<32x128xf32>
    %c0_47 = arith.constant 0 : index
    %c0_48 = arith.constant 0 : index
    %73 = vector.load %arg14[%c0_47, %c0_48] : memref<8x64xf32, #tpu.memory_space<vmem>>, vector<8x64xf32>
    %c0_49 = arith.constant 0 : index
    %c0_50 = arith.constant 0 : index
    %74 = vector.load %arg15[%c0_49, %c0_50] : memref<8x1xf32, #tpu.memory_space<vmem>>, vector<8x1xf32>
    %c120_i32_51 = arith.constant 120 : i32
    %75 = tpu.dynamic_rotate %72 by %c120_i32_51 dim 1 : vector<32x128xf32>, i32 -> vector<32x128xf32>
    %76 = tpu.concatenate %72, %75 in 0 : vector<32x128xf32>, vector<32x128xf32> -> vector<64x128xf32>
    %cst_52 = arith.constant dense<0.000000e+00> : vector<8x128xf32>
    %77 = tpu.matmul %73, %76, %cst_52 {dimension_numbers = #tpu.dot_dimension_numbers<[1], [0], [0], [1], [0, 0, 1, 1], [], []>} : vector<8x64xf32>, vector<64x128xf32>, vector<8x128xf32> -> vector<8x128xf32>
    %78 = vector.broadcast %74 : vector<8x1xf32> to vector<8x128xf32>
    %79 = arith.addf %77, %78 : vector<8x128xf32>
    %c0_53 = arith.constant 0 : index
    %c0_54 = arith.constant 0 : index
    %80 = vector.load %arg16[%c0_53, %c0_54] : memref<8x128xf32, #tpu.memory_space<vmem>>, vector<8x128xf32>
    %81 = arith.mulf %80, %79 : vector<8x128xf32>
    %c0_55 = arith.constant 0 : index
    %c0_56 = arith.constant 0 : index
    %82 = vector.load %arg17[%c0_55, %c0_56] : memref<8x128xf32, #tpu.memory_space<vmem>>, vector<8x128xf32>
    tpu.vector_store %arg17[%c0_55, %c0_56], %81 {strides = array<i32>} : memref<8x128xf32, #tpu.memory_space<vmem>>, vector<8x128xf32>,
    return
  }
  func.func @transform_0(%arg0: i32) -> (i32, i32) {
    %c0_i32 = arith.constant 0 : i32
    %c0_i32_0 = arith.constant 0 : i32
    return %c0_i32, %arg0 : i32, i32
  }
  func.func @transform_1(%arg0: i32) -> (i32, i32) {
    %c0_i32 = arith.constant 0 : i32
    %c0_i32_0 = arith.constant 0 : i32
    %c0_i32_1 = arith.constant 0 : i32
    return %c0_i32, %c0_i32_0 : i32, i32
  }
  func.func @transform_2(%arg0: i32) -> (i32, i32) {
    %c0_i32 = arith.constant 0 : i32
    %c0_i32_0 = arith.constant 0 : i32
    %c0_i32_1 = arith.constant 0 : i32
    return %c0_i32, %c0_i32_0 : i32, i32
  }
  func.func @transform_3(%arg0: i32) -> (i32, i32) {
    %c0_i32 = arith.constant 0 : i32
    %c0_i32_0 = arith.constant 0 : i32
    %c0_i32_1 = arith.constant 0 : i32
    return %c0_i32, %c0_i32_0 : i32, i32
  }
  func.func @transform_4(%arg0: i32) -> (i32, i32) {
    %c0_i32 = arith.constant 0 : i32
    %c0_i32_0 = arith.constant 0 : i32
    %c0_i32_1 = arith.constant 0 : i32
    return %c0_i32, %c0_i32_0 : i32, i32
  }
  func.func @transform_5(%arg0: i32) -> (i32, i32) {
    %c0_i32 = arith.constant 0 : i32
    %c0_i32_0 = arith.constant 0 : i32
    %c0_i32_1 = arith.constant 0 : i32
    return %c0_i32, %c0_i32_0 : i32, i32
  }
  func.func @transform_6(%arg0: i32) -> (i32, i32) {
    %c0_i32 = arith.constant 0 : i32
    %c0_i32_0 = arith.constant 0 : i32
    %c0_i32_1 = arith.constant 0 : i32
    return %c0_i32, %c0_i32_0 : i32, i32
  }
  func.func @transform_7(%arg0: i32) -> (i32, i32) {
    %c0_i32 = arith.constant 0 : i32
    %c0_i32_0 = arith.constant 0 : i32
    %c0_i32_1 = arith.constant 0 : i32
    return %c0_i32, %c0_i32_0 : i32, i32
  }
  func.func @transform_8(%arg0: i32) -> (i32, i32) {
    %c0_i32 = arith.constant 0 : i32
    %c0_i32_0 = arith.constant 0 : i32
    %c0_i32_1 = arith.constant 0 : i32
    return %c0_i32, %c0_i32_0 : i32, i32
  }
  func.func @transform_9(%arg0: i32) -> (i32, i32) {
    %c0_i32 = arith.constant 0 : i32
    %c0_i32_0 = arith.constant 0 : i32
    %c0_i32_1 = arith.constant 0 : i32
    return %c0_i32, %c0_i32_0 : i32, i32
  }
  func.func @transform_10(%arg0: i32) -> (i32, i32) {
    %c0_i32 = arith.constant 0 : i32
    %c0_i32_0 = arith.constant 0 : i32
    %c0_i32_1 = arith.constant 0 : i32
    return %c0_i32, %c0_i32_0 : i32, i32
  }
  func.func @transform_11(%arg0: i32) -> (i32, i32) {
    %c0_i32 = arith.constant 0 : i32
    %c0_i32_0 = arith.constant 0 : i32
    %c0_i32_1 = arith.constant 0 : i32
    return %c0_i32, %c0_i32_0 : i32, i32
  }
  func.func @transform_12(%arg0: i32) -> (i32, i32) {
    %c0_i32 = arith.constant 0 : i32
    %c0_i32_0 = arith.constant 0 : i32
    %c0_i32_1 = arith.constant 0 : i32
    return %c0_i32, %c0_i32_0 : i32, i32
  }
  func.func @transform_13(%arg0: i32) -> (i32, i32) {
    %c0_i32 = arith.constant 0 : i32
    %c0_i32_0 = arith.constant 0 : i32
    %c0_i32_1 = arith.constant 0 : i32
    return %c0_i32, %c0_i32_0 : i32, i32
  }
  func.func @transform_14(%arg0: i32) -> (i32, i32) {
    %c0_i32 = arith.constant 0 : i32
    %c0_i32_0 = arith.constant 0 : i32
    %c0_i32_1 = arith.constant 0 : i32
    return %c0_i32, %c0_i32_0 : i32, i32
  }
  func.func @transform_15(%arg0: i32) -> (i32, i32) {
    %c0_i32 = arith.constant 0 : i32
    %c0_i32_0 = arith.constant 0 : i32
    return %c0_i32, %arg0 : i32, i32
  }
  func.func @transform_16(%arg0: i32) -> (i32, i32) {
    %c0_i32 = arith.constant 0 : i32
    %c0_i32_0 = arith.constant 0 : i32
    return %c0_i32, %arg0 : i32, i32
  }
}

</mosaic_0001>

<llo_original>
// kernel: ti_wf_1d_forward.1
$region0: #{ti_wf_1d_forward.1}
  #allocation0 [shape = 'u32[]', space=smem, size = 0x4, offset = 0x4, fixed_abs, tag = 'smem constant byte address 0x4 - core index']
  #allocation1 [shape = 'u32[144,128]{1,0:T(1,128)}', space=vmem, size = 0x12000, scoped, tag = 'internal scratch']
  %s0 = inlined_call_operand.vmem [shape: f32[8,128], index: 0, kind: input, shape index: {}]
  %s1 = inlined_call_operand.vmem [shape: f32[16,16], index: 1, kind: input, shape index: {}]
  %s2 = inlined_call_operand.vmem [shape: f32[16,1], index: 2, kind: input, shape index: {}]
  %s3 = inlined_call_operand.vmem [shape: f32[32,32], index: 3, kind: input, shape index: {}]
  %s4 = inlined_call_operand.vmem [shape: f32[32,1], index: 4, kind: input, shape index: {}]
  %s5 = inlined_call_operand.vmem [shape: f32[56,64], index: 5, kind: input, shape index: {}]
  %s6 = inlined_call_operand.vmem [shape: f32[56,1], index: 6, kind: input, shape index: {}]
  %s7 = inlined_call_operand.vmem [shape: f32[104,112], index: 7, kind: input, shape index: {}]
  %s8 = inlined_call_operand.vmem [shape: f32[104,1], index: 8, kind: input, shape index: {}]
  %s9 = inlined_call_operand.vmem [shape: f32[56,208], index: 9, kind: input, shape index: {}]
  %s10 = inlined_call_operand.vmem [shape: f32[56,1], index: 10, kind: input, shape index: {}]
  %s11 = inlined_call_operand.vmem [shape: f32[32,112], index: 11, kind: input, shape index: {}]
  %s12 = inlined_call_operand.vmem [shape: f32[32,1], index: 12, kind: input, shape index: {}]
  %s13 = inlined_call_operand.vmem [shape: f32[8,64], index: 13, kind: input, shape index: {}]
  %s14 = inlined_call_operand.vmem [shape: f32[8,1], index: 14, kind: input, shape index: {}]
  %s15 = inlined_call_operand.vmem [shape: f32[8,128], index: 15, kind: input, shape index: {}]
  %s16 = inlined_call_operand.vmem [shape: f32[8,128], index: 16, kind: output, shape index: {}]
  %s17 = sld [smem:[#allocation0]]
  $region74: #{ti_wf_1d_forward.1} parent=0
    _
  %s19 = ssub.s32 1, %s17
  %s20 = scalar_select 0, %s19, %s17
  // Predicated region
  $region2: #{ti_wf_1d_forward.1} parent=0 // pred_check
    _
  $region3: #{ti_wf_1d_forward.1} parent=0 // pred_check_branch
    %22 = sbr.rel (0) target = $region5
  $region4: #{ti_wf_1d_forward.1} parent=0 // pred_region
    _
  $region5: #{ti_wf_1d_forward.1} parent=0 // pred_fallthru
    _
  // Predicated region
  $region6: #{ti_wf_1d_forward.1} parent=0 // pred_check
    _
  $region7: #{ti_wf_1d_forward.1} parent=0 // pred_check_branch
    %24 = sbr.rel (0) target = $region9
  $region8: #{ti_wf_1d_forward.1} parent=0 // pred_region
    _
  $region9: #{ti_wf_1d_forward.1} parent=0 // pred_fallthru
    _
  // Predicated region
  $region10: #{ti_wf_1d_forward.1} parent=0 // pred_check
    _
  $region11: #{ti_wf_1d_forward.1} parent=0 // pred_check_branch
    %26 = sbr.rel (0) target = $region13
  $region12: #{ti_wf_1d_forward.1} parent=0 // pred_region
    _
  $region13: #{ti_wf_1d_forward.1} parent=0 // pred_fallthru
    _
  // Predicated region
  $region14: #{ti_wf_1d_forward.1} parent=0 // pred_check
    _
  $region15: #{ti_wf_1d_forward.1} parent=0 // pred_check_branch
    %28 = sbr.rel (0) target = $region17
  $region16: #{ti_wf_1d_forward.1} parent=0 // pred_region
    _
  $region17: #{ti_wf_1d_forward.1} parent=0 // pred_fallthru
    _
  // Predicated region
  $region18: #{ti_wf_1d_forward.1} parent=0 // pred_check
    _
  $region19: #{ti_wf_1d_forward.1} parent=0 // pred_check_branch
    %30 = sbr.rel (0) target = $region21
  $region20: #{ti_wf_1d_forward.1} parent=0 // pred_region
    _
  $region21: #{ti_wf_1d_forward.1} parent=0 // pred_fallthru
    _
  // Predicated region
  $region22: #{ti_wf_1d_forward.1} parent=0 // pred_check
    _
  $region23: #{ti_wf_1d_forward.1} parent=0 // pred_check_branch
    %32 = sbr.rel (0) target = $region25
  $region24: #{ti_wf_1d_forward.1} parent=0 // pred_region
    _
  $region25: #{ti_wf_1d_forward.1} parent=0 // pred_fallthru
    _
  // Predicated region
  $region26: #{ti_wf_1d_forward.1} parent=0 // pred_check
    _
  $region27: #{ti_wf_1d_forward.1} parent=0 // pred_check_branch
    %34 = sbr.rel (0) target = $region29
  $region28: #{ti_wf_1d_forward.1} parent=0 // pred_region
    _
  $region29: #{ti_wf_1d_forward.1} parent=0 // pred_fallthru
    _
  // Predicated region
  $region30: #{ti_wf_1d_forward.1} parent=0 // pred_check
    _
  $region31: #{ti_wf_1d_forward.1} parent=0 // pred_check_branch
    %36 = sbr.rel (0) target = $region33
  $region32: #{ti_wf_1d_forward.1} parent=0 // pred_region
    _
  $region33: #{ti_wf_1d_forward.1} parent=0 // pred_fallthru
    _
  // Predicated region
  $region34: #{ti_wf_1d_forward.1} parent=0 // pred_check
    _
  $region35: #{ti_wf_1d_forward.1} parent=0 // pred_check_branch
    %38 = sbr.rel (0) target = $region37
  $region36: #{ti_wf_1d_forward.1} parent=0 // pred_region
    _
  $region37: #{ti_wf_1d_forward.1} parent=0 // pred_fallthru
    _
  // Predicated region
  $region38: #{ti_wf_1d_forward.1} parent=0 // pred_check
    _
  $region39: #{ti_wf_1d_forward.1} parent=0 // pred_check_branch
    %40 = sbr.rel (0) target = $region41
  $region40: #{ti_wf_1d_forward.1} parent=0 // pred_region
    _
  $region41: #{ti_wf_1d_forward.1} parent=0 // pred_fallthru
    _
  // Predicated region
  $region42: #{ti_wf_1d_forward.1} parent=0 // pred_check
    _
  $region43: #{ti_wf_1d_forward.1} parent=0 // pred_check_branch
    %42 = sbr.rel (0) target = $region45
  $region44: #{ti_wf_1d_forward.1} parent=0 // pred_region
    _
  $region45: #{ti_wf_1d_forward.1} parent=0 // pred_fallthru
    _
  // Predicated region
  $region46: #{ti_wf_1d_forward.1} parent=0 // pred_check
    _
  $region47: #{ti_wf_1d_forward.1} parent=0 // pred_check_branch
    %44 = sbr.rel (0) target = $region49
  $region48: #{ti_wf_1d_forward.1} parent=0 // pred_region
    _
  $region49: #{ti_wf_1d_forward.1} parent=0 // pred_fallthru
    _
  // Predicated region
  $region50: #{ti_wf_1d_forward.1} parent=0 // pred_check
    _
  $region51: #{ti_wf_1d_forward.1} parent=0 // pred_check_branch
    %46 = sbr.rel (0) target = $region53
  $region52: #{ti_wf_1d_forward.1} parent=0 // pred_region
    _
  $region53: #{ti_wf_1d_forward.1} parent=0 // pred_fallthru
    _
  // Predicated region
  $region54: #{ti_wf_1d_forward.1} parent=0 // pred_check
    _
  $region55: #{ti_wf_1d_forward.1} parent=0 // pred_check_branch
    %48 = sbr.rel (0) target = $region57
  $region56: #{ti_wf_1d_forward.1} parent=0 // pred_region
    _
  $region57: #{ti_wf_1d_forward.1} parent=0 // pred_fallthru
    _
  // Predicated region
  $region58: #{ti_wf_1d_forward.1} parent=0 // pred_check
    _
  $region59: #{ti_wf_1d_forward.1} parent=0 // pred_check_branch
    %50 = sbr.rel (0) target = $region61
  $region60: #{ti_wf_1d_forward.1} parent=0 // pred_region
    _
  $region61: #{ti_wf_1d_forward.1} parent=0 // pred_fallthru
    _
  // Predicated region
  $region62: #{ti_wf_1d_forward.1} parent=0 // pred_check
    _
  $region63: #{ti_wf_1d_forward.1} parent=0 // pred_check_branch
    %52 = sbr.rel (0) target = $region65
  $region64: #{ti_wf_1d_forward.1} parent=0 // pred_region
    _
  $region65: #{ti_wf_1d_forward.1} parent=0 // pred_fallthru
    _
  %v53 = vld [vmem:[%s0] sm:$0xff]
  %v54 = vld [vmem:[%s1] sm:$0xff]
  %v55 = vld [vmem:[%s1 + $0x8] sm:$0xff]
  %v56 = vld [vmem:[%s2] sm:$0xff]
  %v57 = vld [vmem:[%s2 + $0x8] sm:$0xff]
  %58 = vrot.lane.b32.xlu0 %v53, 120
  %v59 = vpop.permute.xlu0 %58
  %61 = vset.pattern.permute.xlu0 0
  %62 = vperm.xlu0 %61, %v56
  %v63 = vpop.permute.xlu0 %62
  %66 = vset.pattern.permute.xlu0 0
  %67 = vperm.xlu0 %66, %v57
  %v68 = vpop.permute.xlu0 %67
  %vm70 = vcmask 130048
  %v72 = vsel %vm70, %v54, 0
  %v75 = vsel %vm70, %v55, 0
  %77 = vmatprep.subr.mxu0 0.0
  %78 = vmatpush1.msra.mxu0 %v53
  %79 = vmatprep.subr.mxu0 0.0
  %80 = vmatpush1.msra.mxu0 %v59
  %81 = vmatprep.subr.mxu0 0.0
  %82 = vmatpush1.msra.mxu0 0.0
  %83 = vmatprep.subr.mxu0 0.0
  %84 = vmatpush1.msra.mxu0 0.0
  %85 = vmatprep.subr.mxu0 0.0
  %86 = vmatpush1.msra.mxu0 0.0
  %87 = vmatprep.subr.mxu0 0.0
  %88 = vmatpush1.msra.mxu0 0.0
  %89 = vmatprep.subr.mxu0 0.0
  %90 = vmatpush1.msra.mxu0 0.0
  %91 = vmatprep.subr.mxu0 0.0
  %92 = vmatpush1.msra.mxu0 0.0
  %93 = vmatprep.subr.mxu0 0.0
  %94 = vmatpush1.msra.mxu0 0.0
  %95 = vmatprep.subr.mxu0 0.0
  %96 = vmatpush1.msra.mxu0 0.0
  %97 = vmatprep.subr.mxu0 0.0
  %98 = vmatpush1.msra.mxu0 0.0
  %99 = vmatprep.subr.mxu0 0.0
  %100 = vmatpush1.msra.mxu0 0.0
  %101 = vmatprep.subr.mxu0 0.0
  %102 = vmatpush1.msra.mxu0 0.0
  %103 = vmatprep.subr.mxu0 0.0
  %104 = vmatpush1.msra.mxu0 0.0
  %105 = vmatprep.subr.mxu0 0.0
  %106 = vmatpush1.msra.mxu0 0.0
  %107 = vmatprep.subr.mxu0 0.0
  %108 = vmatpush1.msra.mxu0 0.0
  %109 = vmatprep.subr.mxu0 0.0
  %110 = vmatpush1.msra.mxu0 0.0
  %111 = vmatprep.subr.mxu0 0.0
  %112 = vmatpush1.msra.mxu0 0.0
  %113 = vmatprep.subr.mxu0 0.0
  %114 = vmatpush1.msra.mxu0 0.0
  %115 = vmatprep.subr.mxu0 0.0
  %116 = vmatpush1.msra.mxu0 0.0
  %117 = vmatprep.subr.mxu0 0.0
  %118 = vmatpush1.msra.mxu0 0.0
  %119 = vmatprep.subr.mxu0 0.0
  %120 = vmatpush1.msra.mxu0 0.0
  %121 = vmatprep.subr.mxu0 0.0
  %122 = vmatpush1.msra.mxu0 0.0
  %123 = vmatprep.subr.mxu0 0.0
  %124 = vmatpush1.msra.mxu0 0.0
  %125 = vmatprep.subr.mxu0 0.0
  %126 = vmatpush1.msra.mxu0 0.0
  %127 = vmatprep.subr.mxu0 0.0
  %128 = vmatpush1.msra.mxu0 0.0
  %129 = vmatprep.subr.mxu0 0.0
  %130 = vmatpush1.msra.mxu0 0.0
  %131 = vmatprep.subr.mxu0 0.0
  %132 = vmatpush1.msra.mxu0 0.0
  %133 = vmatprep.subr.mxu0 0.0
  %134 = vmatpush1.msra.mxu0 0.0
  %135 = vmatprep.subr.mxu0 0.0
  %136 = vmatpush1.msra.mxu0 0.0
  %137 = vmatprep.subr.mxu0 0.0
  %138 = vmatpush1.msra.mxu0 0.0
  %139 = vmatprep.subr.mxu0 0.0
  %140 = vmatpush1.msra.mxu0 0.0
  %141 = vmatprep.mubr.f32.mxu0 0.0
  %142 = vmatmul.mubr.f32.gmra.mrb[0].mxu0 %v72
  %v143 = vpop.f32.mrb[0].mxu0
  %v144 = vadd.f32 %v63, %v143
  %v145 = vpop.f32.mrb[0].mxu0
  %146 = vmatprep.mubr.f32.mxu0 0.0
  %147 = vmatmul.mubr.f32.gmra.mrb[0].mxu0 %v75
  %v148 = vpop.f32.mrb[0].mxu0
  %v149 = vadd.f32 %v68, %v148
  %v150 = vpop.f32.mrb[0].mxu0
  %151 = vdwg.mxu0
  %vm152 = vcmp.ge.f32.partialorder %v144, 0.0
  %vm153 = vcmp.ge.f32.partialorder %v149, 0.0
  %v154 = vmul.f32 %v144, 0.01
  %v155 = vmul.f32 %v149, 0.01
  %v156 = vsel %vm152, %v144, %v154
  %v157 = vsel %vm153, %v149, %v155
  %v158 = vld [vmem:[%s3] sm:$0xff]
  %v159 = vld [vmem:[%s3 + $0x8] sm:$0xff]
  %v160 = vld [vmem:[%s3 + $0x10] sm:$0xff]
  %v161 = vld [vmem:[%s3 + $0x18] sm:$0xff]
  %v162 = vld [vmem:[%s4] sm:$0xff]
  %v163 = vld [vmem:[%s4 + $0x8] sm:$0xff]
  %v164 = vld [vmem:[%s4 + $0x10] sm:$0xff]
  %v165 = vld [vmem:[%s4 + $0x18] sm:$0xff]
  %166 = vrot.lane.b32.xlu0 %v156, 120
  %v167 = vpop.permute.xlu0 %166
  %168 = vrot.lane.b32.xlu0 %v157, 120
  %v169 = vpop.permute.xlu0 %168
  %171 = vset.pattern.permute.xlu0 0
  %172 = vperm.xlu0 %171, %v162
  %v173 = vpop.permute.xlu0 %172
  %176 = vset.pattern.permute.xlu0 0
  %177 = vperm.xlu0 %176, %v163
  %v178 = vpop.permute.xlu0 %177
  %181 = vset.pattern.permute.xlu0 0
  %182 = vperm.xlu0 %181, %v164
  %v183 = vpop.permute.xlu0 %182
  %186 = vset.pattern.permute.xlu0 0
  %187 = vperm.xlu0 %186, %v165
  %v188 = vpop.permute.xlu0 %187
  %vm190 = vcmask 261120
  %v192 = vsel %vm190, %v158, 0
  %v195 = vsel %vm190, %v159, 0
  %v198 = vsel %vm190, %v160, 0
  %v201 = vsel %vm190, %v161, 0
  %203 = vmatprep.subr.mxu0 0.0
  %204 = vmatpush1.msra.mxu0 %v156
  %205 = vmatprep.subr.mxu0 0.0
  %206 = vmatpush1.msra.mxu0 %v157
  %207 = vmatprep.subr.mxu0 0.0
  %208 = vmatpush1.msra.mxu0 %v167
  %209 = vmatprep.subr.mxu0 0.0
  %210 = vmatpush1.msra.mxu0 %v169
  %211 = vmatprep.subr.mxu0 0.0
  %212 = vmatpush1.msra.mxu0 0.0
  %213 = vmatprep.subr.mxu0 0.0
  %214 = vmatpush1.msra.mxu0 0.0
  %215 = vmatprep.subr.mxu0 0.0
  %216 = vmatpush1.msra.mxu0 0.0
  %217 = vmatprep.subr.mxu0 0.0
  %218 = vmatpush1.msra.mxu0 0.0
  %219 = vmatprep.subr.mxu0 0.0
  %220 = vmatpush1.msra.mxu0 0.0
  %221 = vmatprep.subr.mxu0 0.0
  %222 = vmatpush1.msra.mxu0 0.0
  %223 = vmatprep.subr.mxu0 0.0
  %224 = vmatpush1.msra.mxu0 0.0
  %225 = vmatprep.subr.mxu0 0.0
  %226 = vmatpush1.msra.mxu0 0.0
  %227 = vmatprep.subr.mxu0 0.0
  %228 = vmatpush1.msra.mxu0 0.0
  %229 = vmatprep.subr.mxu0 0.0
  %230 = vmatpush1.msra.mxu0 0.0
  %231 = vmatprep.subr.mxu0 0.0
  %232 = vmatpush1.msra.mxu0 0.0
  %233 = vmatprep.subr.mxu0 0.0
  %234 = vmatpush1.msra.mxu0 0.0
  %235 = vmatprep.subr.mxu0 0.0
  %236 = vmatpush1.msra.mxu0 0.0
  %237 = vmatprep.subr.mxu0 0.0
  %238 = vmatpush1.msra.mxu0 0.0
  %239 = vmatprep.subr.mxu0 0.0
  %240 = vmatpush1.msra.mxu0 0.0
  %241 = vmatprep.subr.mxu0 0.0
  %242 = vmatpush1.msra.mxu0 0.0
  %243 = vmatprep.subr.mxu0 0.0
  %244 = vmatpush1.msra.mxu0 0.0
  %245 = vmatprep.subr.mxu0 0.0
  %246 = vmatpush1.msra.mxu0 0.0
  %247 = vmatprep.subr.mxu0 0.0
  %248 = vmatpush1.msra.mxu0 0.0
  %249 = vmatprep.subr.mxu0 0.0
  %250 = vmatpush1.msra.mxu0 0.0
  %251 = vmatprep.subr.mxu0 0.0
  %252 = vmatpush1.msra.mxu0 0.0
  %253 = vmatprep.subr.mxu0 0.0
  %254 = vmatpush1.msra.mxu0 0.0
  %255 = vmatprep.subr.mxu0 0.0
  %256 = vmatpush1.msra.mxu0 0.0
  %257 = vmatprep.subr.mxu0 0.0
  %258 = vmatpush1.msra.mxu0 0.0
  %259 = vmatprep.subr.mxu0 0.0
  %260 = vmatpush1.msra.mxu0 0.0
  %261 = vmatprep.subr.mxu0 0.0
  %262 = vmatpush1.msra.mxu0 0.0
  %263 = vmatprep.subr.mxu0 0.0
  %264 = vmatpush1.msra.mxu0 0.0
  %265 = vmatprep.subr.mxu0 0.0
  %266 = vmatpush1.msra.mxu0 0.0
  %267 = vmatprep.mubr.f32.mxu0 0.0
  %268 = vmatmul.mubr.f32.gmra.mrb[0].mxu0 %v192
  %v269 = vpop.f32.mrb[0].mxu0
  %v270 = vadd.f32 %v173, %v269
  %v271 = vpop.f32.mrb[0].mxu0
  %272 = vmatprep.mubr.f32.mxu0 0.0
  %273 = vmatmul.mubr.f32.gmra.mrb[0].mxu0 %v195
  %v274 = vpop.f32.mrb[0].mxu0
  %v275 = vadd.f32 %v178, %v274
  %v276 = vpop.f32.mrb[0].mxu0
  %277 = vmatprep.mubr.f32.mxu0 0.0
  %278 = vmatmul.mubr.f32.gmra.mrb[0].mxu0 %v198
  %v279 = vpop.f32.mrb[0].mxu0
  %v280 = vadd.f32 %v183, %v279
  %v281 = vpop.f32.mrb[0].mxu0
  %282 = vmatprep.mubr.f32.mxu0 0.0
  %283 = vmatmul.mubr.f32.gmra.mrb[0].mxu0 %v201
  %v284 = vpop.f32.mrb[0].mxu0
  %v285 = vadd.f32 %v188, %v284
  %v286 = vpop.f32.mrb[0].mxu0
  %287 = vdwg.mxu0
  %vm288 = vcmp.ge.f32.partialorder %v270, 0.0
  %vm289 = vcmp.ge.f32.partialorder %v275, 0.0
  %vm290 = vcmp.ge.f32.partialorder %v280, 0.0
  %vm291 = vcmp.ge.f32.partialorder %v285, 0.0
  %v292 = vmul.f32 %v270, 0.01
  %v293 = vmul.f32 %v275, 0.01
  %v294 = vmul.f32 %v280, 0.01
  %v295 = vmul.f32 %v285, 0.01
  %v296 = vsel %vm288, %v270, %v292
  %v297 = vsel %vm289, %v275, %v293
  %v298 = vsel %vm290, %v280, %v294
  %v299 = vsel %vm291, %v285, %v295
  %v300 = vld [vmem:[%s5] sm:$0xff]
  %v301 = vld [vmem:[%s5 + $0x8] sm:$0xff]
  %v302 = vld [vmem:[%s5 + $0x10] sm:$0xff]
  %v303 = vld [vmem:[%s5 + $0x18] sm:$0xff]
  %v304 = vld [vmem:[%s5 + $0x20] sm:$0xff]
  %v305 = vld [vmem:[%s5 + $0x28] sm:$0xff]
  %v306 = vld [vmem:[%s5 + $0x30] sm:$0xff]
  %v307 = vld [vmem:[%s6] sm:$0xff]
  %v308 = vld [vmem:[%s6 + $0x8] sm:$0xff]
  %v309 = vld [vmem:[%s6 + $0x10] sm:$0xff]
  %v310 = vld [vmem:[%s6 + $0x18] sm:$0xff]
  %v311 = vld [vmem:[%s6 + $0x20] sm:$0xff]
  %v312 = vld [vmem:[%s6 + $0x28] sm:$0xff]
  %v313 = vld [vmem:[%s6 + $0x30] sm:$0xff]
  %314 = vrot.lane.b32.xlu0 %v296, 120
  %v315 = vpop.permute.xlu0 %314
  %316 = vrot.lane.b32.xlu0 %v297, 120
  %v317 = vpop.permute.xlu0 %316
  %318 = vrot.lane.b32.xlu0 %v298, 120
  %v319 = vpop.permute.xlu0 %318
  %320 = vrot.lane.b32.xlu0 %v299, 120
  %v321 = vpop.permute.xlu0 %320
  %323 = vset.pattern.permute.xlu0 0
  %324 = vperm.xlu0 %323, %v307
  %v325 = vpop.permute.xlu0 %324
  %328 = vset.pattern.permute.xlu0 0
  %329 = vperm.xlu0 %328, %v308
  %v330 = vpop.permute.xlu0 %329
  %333 = vset.pattern.permute.xlu0 0
  %334 = vperm.xlu0 %333, %v309
  %v335 = vpop.permute.xlu0 %334
  %338 = vset.pattern.permute.xlu0 0
  %339 = vperm.xlu0 %338, %v310
  %v340 = vpop.permute.xlu0 %339
  %343 = vset.pattern.permute.xlu0 0
  %344 = vperm.xlu0 %343, %v311
  %v345 = vpop.permute.xlu0 %344
  %348 = vset.pattern.permute.xlu0 0
  %349 = vperm.xlu0 %348, %v312
  %v350 = vpop.permute.xlu0 %349
  %353 = vset.pattern.permute.xlu0 0
  %354 = vperm.xlu0 %353, %v313
  %v355 = vpop.permute.xlu0 %354
  %vm357 = vcmask 523264
  %v359 = vsel %vm357, %v300, 0
  %v362 = vsel %vm357, %v301, 0
  %v365 = vsel %vm357, %v302, 0
  %v368 = vsel %vm357, %v303, 0
  %v371 = vsel %vm357, %v304, 0
  %v374 = vsel %vm357, %v305, 0
  %v377 = vsel %vm357, %v306, 0
  %379 = vmatprep.subr.mxu0 0.0
  %380 = vmatpush1.msra.mxu0 %v296
  %381 = vmatprep.subr.mxu0 0.0
  %382 = vmatpush1.msra.mxu0 %v297
  %383 = vmatprep.subr.mxu0 0.0
  %384 = vmatpush1.msra.mxu0 %v298
  %385 = vmatprep.subr.mxu0 0.0
  %386 = vmatpush1.msra.mxu0 %v299
  %387 = vmatprep.subr.mxu0 0.0
  %388 = vmatpush1.msra.mxu0 %v315
  %389 = vmatprep.subr.mxu0 0.0
  %390 = vmatpush1.msra.mxu0 %v317
  %391 = vmatprep.subr.mxu0 0.0
  %392 = vmatpush1.msra.mxu0 %v319
  %393 = vmatprep.subr.mxu0 0.0
  %394 = vmatpush1.msra.mxu0 %v321
  %395 = vmatprep.subr.mxu0 0.0
  %396 = vmatpush1.msra.mxu0 0.0
  %397 = vmatprep.subr.mxu0 0.0
  %398 = vmatpush1.msra.mxu0 0.0
  %399 = vmatprep.subr.mxu0 0.0
  %400 = vmatpush1.msra.mxu0 0.0
  %401 = vmatprep.subr.mxu0 0.0
  %402 = vmatpush1.msra.mxu0 0.0
  %403 = vmatprep.subr.mxu0 0.0
  %404 = vmatpush1.msra.mxu0 0.0
  %405 = vmatprep.subr.mxu0 0.0
  %406 = vmatpush1.msra.mxu0 0.0
  %407 = vmatprep.subr.mxu0 0.0
  %408 = vmatpush1.msra.mxu0 0.0
  %409 = vmatprep.subr.mxu0 0.0
  %410 = vmatpush1.msra.mxu0 0.0
  %411 = vmatprep.subr.mxu0 0.0
  %412 = vmatpush1.msra.mxu0 0.0
  %413 = vmatprep.subr.mxu0 0.0
  %414 = vmatpush1.msra.mxu0 0.0
  %415 = vmatprep.subr.mxu0 0.0
  %416 = vmatpush1.msra.mxu0 0.0
  %417 = vmatprep.subr.mxu0 0.0
  %418 = vmatpush1.msra.mxu0 0.0
  %419 = vmatprep.subr.mxu0 0.0
  %420 = vmatpush1.msra.mxu0 0.0
  %421 = vmatprep.subr.mxu0 0.0
  %422 = vmatpush1.msra.mxu0 0.0
  %423 = vmatprep.subr.mxu0 0.0
  %424 = vmatpush1.msra.mxu0 0.0
  %425 = vmatprep.subr.mxu0 0.0
  %426 = vmatpush1.msra.mxu0 0.0
  %427 = vmatprep.subr.mxu0 0.0
  %428 = vmatpush1.msra.mxu0 0.0
  %429 = vmatprep.subr.mxu0 0.0
  %430 = vmatpush1.msra.mxu0 0.0
  %431 = vmatprep.subr.mxu0 0.0
  %432 = vmatpush1.msra.mxu0 0.0
  %433 = vmatprep.subr.mxu0 0.0
  %434 = vmatpush1.msra.mxu0 0.0
  %435 = vmatprep.subr.mxu0 0.0
  %436 = vmatpush1.msra.mxu0 0.0
  %437 = vmatprep.subr.mxu0 0.0
  %438 = vmatpush1.msra.mxu0 0.0
  %439 = vmatprep.subr.mxu0 0.0
  %440 = vmatpush1.msra.mxu0 0.0
  %441 = vmatprep.subr.mxu0 0.0
  %442 = vmatpush1.msra.mxu0 0.0
  %443 = vmatprep.mubr.f32.mxu0 0.0
  %444 = vmatmul.mubr.f32.gmra.mrb[0].mxu0 %v359
  %v445 = vpop.f32.mrb[0].mxu0
  %v446 = vadd.f32 %v325, %v445
  %v447 = vpop.f32.mrb[0].mxu0
  %448 = vmatprep.mubr.f32.mxu0 0.0
  %449 = vmatmul.mubr.f32.gmra.mrb[0].mxu0 %v362
  %v450 = vpop.f32.mrb[0].mxu0
  %v451 = vadd.f32 %v330, %v450
  %v452 = vpop.f32.mrb[0].mxu0
  %453 = vmatprep.mubr.f32.mxu0 0.0
  %454 = vmatmul.mubr.f32.gmra.mrb[0].mxu0 %v365
  %v455 = vpop.f32.mrb[0].mxu0
  %v456 = vadd.f32 %v335, %v455
  %v457 = vpop.f32.mrb[0].mxu0
  %458 = vmatprep.mubr.f32.mxu0 0.0
  %459 = vmatmul.mubr.f32.gmra.mrb[0].mxu0 %v368
  %v460 = vpop.f32.mrb[0].mxu0
  %v461 = vadd.f32 %v340, %v460
  %v462 = vpop.f32.mrb[0].mxu0
  %463 = vmatprep.mubr.f32.mxu0 0.0
  %464 = vmatmul.mubr.f32.gmra.mrb[0].mxu0 %v371
  %v465 = vpop.f32.mrb[0].mxu0
  %v466 = vadd.f32 %v345, %v465
  %v467 = vpop.f32.mrb[0].mxu0
  %468 = vmatprep.mubr.f32.mxu0 0.0
  %469 = vmatmul.mubr.f32.gmra.mrb[0].mxu0 %v374
  %v470 = vpop.f32.mrb[0].mxu0
  %v471 = vadd.f32 %v350, %v470
  %v472 = vpop.f32.mrb[0].mxu0
  %473 = vmatprep.mubr.f32.mxu0 0.0
  %474 = vmatmul.mubr.f32.gmra.mrb[0].mxu0 %v377
  %v475 = vpop.f32.mrb[0].mxu0
  %v476 = vadd.f32 %v355, %v475
  %v477 = vpop.f32.mrb[0].mxu0
  %478 = vdwg.mxu0
  %vm479 = vcmp.ge.f32.partialorder %v446, 0.0
  %vm480 = vcmp.ge.f32.partialorder %v451, 0.0
  %vm481 = vcmp.ge.f32.partialorder %v456, 0.0
  %vm482 = vcmp.ge.f32.partialorder %v461, 0.0
  %vm483 = vcmp.ge.f32.partialorder %v466, 0.0
  %vm484 = vcmp.ge.f32.partialorder %v471, 0.0
  %vm485 = vcmp.ge.f32.partialorder %v476, 0.0
  %v486 = vmul.f32 %v446, 0.01
  %v487 = vmul.f32 %v451, 0.01
  %v488 = vmul.f32 %v456, 0.01
  %v489 = vmul.f32 %v461, 0.01
  %v490 = vmul.f32 %v466, 0.01
  %v491 = vmul.f32 %v471, 0.01
  %v492 = vmul.f32 %v476, 0.01
  %v493 = vsel %vm479, %v446, %v486
  %v494 = vsel %vm480, %v451, %v487
  %v495 = vsel %vm481, %v456, %v488
  %v496 = vsel %vm482, %v461, %v489
  %v497 = vsel %vm483, %v466, %v490
  %v498 = vsel %vm484, %v471, %v491
  %v499 = vsel %vm485, %v476, %v492
  %v500 = vld [vmem:[%s7] sm:$0xff]
  %v501 = vld [vmem:[%s7 + $0x8] sm:$0xff]
  %v502 = vld [vmem:[%s7 + $0x10] sm:$0xff]
  %v503 = vld [vmem:[%s7 + $0x18] sm:$0xff]
  %v504 = vld [vmem:[%s7 + $0x20] sm:$0xff]
  %v505 = vld [vmem:[%s7 + $0x28] sm:$0xff]
  %v506 = vld [vmem:[%s7 + $0x30] sm:$0xff]
  %v507 = vld [vmem:[%s7 + $0x38] sm:$0xff]
  %v508 = vld [vmem:[%s7 + $0x40] sm:$0xff]
  %v509 = vld [vmem:[%s7 + $0x48] sm:$0xff]
  %v510 = vld [vmem:[%s7 + $0x50] sm:$0xff]
  %v511 = vld [vmem:[%s7 + $0x58] sm:$0xff]
  %v512 = vld [vmem:[%s7 + $0x60] sm:$0xff]
  %v513 = vld [vmem:[%s8] sm:$0xff]
  %v514 = vld [vmem:[%s8 + $0x8] sm:$0xff]
  %v515 = vld [vmem:[%s8 + $0x10] sm:$0xff]
  %v516 = vld [vmem:[%s8 + $0x18] sm:$0xff]
  %v517 = vld [vmem:[%s8 + $0x20] sm:$0xff]
  %v518 = vld [vmem:[%s8 + $0x28] sm:$0xff]
  %v519 = vld [vmem:[%s8 + $0x30] sm:$0xff]
  %v520 = vld [vmem:[%s8 + $0x38] sm:$0xff]
  %v521 = vld [vmem:[%s8 + $0x40] sm:$0xff]
  %v522 = vld [vmem:[%s8 + $0x48] sm:$0xff]
  %v523 = vld [vmem:[%s8 + $0x50] sm:$0xff]
  %v524 = vld [vmem:[%s8 + $0x58] sm:$0xff]
  %v525 = vld [vmem:[%s8 + $0x60] sm:$0xff]
  %526 = vrot.lane.b32.xlu0 %v493, 120
  %v527 = vpop.permute.xlu0 %526
  %528 = vrot.lane.b32.xlu0 %v494, 120
  %v529 = vpop.permute.xlu0 %528
  %530 = vrot.lane.b32.xlu0 %v495, 120
  %v531 = vpop.permute.xlu0 %530
  %532 = vrot.lane.b32.xlu0 %v496, 120
  %v533 = vpop.permute.xlu0 %532
  %534 = vrot.lane.b32.xlu0 %v497, 120
  %v535 = vpop.permute.xlu0 %534
  %536 = vrot.lane.b32.xlu0 %v498, 120
  %v537 = vpop.permute.xlu0 %536
  %538 = vrot.lane.b32.xlu0 %v499, 120
  %v539 = vpop.permute.xlu0 %538
  %541 = vset.pattern.permute.xlu0 0
  %542 = vperm.xlu0 %541, %v513
  %v543 = vpop.permute.xlu0 %542
  %546 = vset.pattern.permute.xlu0 0
  %547 = vperm.xlu0 %546, %v514
  %v548 = vpop.permute.xlu0 %547
  %551 = vset.pattern.permute.xlu0 0
  %552 = vperm.xlu0 %551, %v515
  %v553 = vpop.permute.xlu0 %552
  %556 = vset.pattern.permute.xlu0 0
  %557 = vperm.xlu0 %556, %v516
  %v558 = vpop.permute.xlu0 %557
  %561 = vset.pattern.permute.xlu0 0
  %562 = vperm.xlu0 %561, %v517
  %v563 = vpop.permute.xlu0 %562
  %566 = vset.pattern.permute.xlu0 0
  %567 = vperm.xlu0 %566, %v518
  %v568 = vpop.permute.xlu0 %567
  %571 = vset.pattern.permute.xlu0 0
  %572 = vperm.xlu0 %571, %v519
  %v573 = vpop.permute.xlu0 %572
  %576 = vset.pattern.permute.xlu0 0
  %577 = vperm.xlu0 %576, %v520
  %v578 = vpop.permute.xlu0 %577
  %581 = vset.pattern.permute.xlu0 0
  %582 = vperm.xlu0 %581, %v521
  %v583 = vpop.permute.xlu0 %582
  %586 = vset.pattern.permute.xlu0 0
  %587 = vperm.xlu0 %586, %v522
  %v588 = vpop.permute.xlu0 %587
  %591 = vset.pattern.permute.xlu0 0
  %592 = vperm.xlu0 %591, %v523
  %v593 = vpop.permute.xlu0 %592
  %596 = vset.pattern.permute.xlu0 0
  %597 = vperm.xlu0 %596, %v524
  %v598 = vpop.permute.xlu0 %597
  %601 = vset.pattern.permute.xlu0 0
  %602 = vperm.xlu0 %601, %v525
  %v603 = vpop.permute.xlu0 %602
  %vm605 = vcmask 916480
  %v607 = vsel %vm605, %v500, 0
  %v610 = vsel %vm605, %v501, 0
  %v613 = vsel %vm605, %v502, 0
  %v616 = vsel %vm605, %v503, 0
  %v619 = vsel %vm605, %v504, 0
  %v622 = vsel %vm605, %v505, 0
  %v625 = vsel %vm605, %v506, 0
  %v628 = vsel %vm605, %v507, 0
  %v631 = vsel %vm605, %v508, 0
  %v634 = vsel %vm605, %v509, 0
  %v637 = vsel %vm605, %v510, 0
  %v640 = vsel %vm605, %v511, 0
  %v643 = vsel %vm605, %v512, 0
  %645 = vmatprep.subr.mxu0 0.0
  %646 = vmatpush1.msra.mxu0 %v493
  %647 = vmatprep.subr.mxu0 0.0
  %648 = vmatpush1.msra.mxu0 %v494
  %649 = vmatprep.subr.mxu0 0.0
  %650 = vmatpush1.msra.mxu0 %v495
  %651 = vmatprep.subr.mxu0 0.0
  %652 = vmatpush1.msra.mxu0 %v496
  %653 = vmatprep.subr.mxu0 0.0
  %654 = vmatpush1.msra.mxu0 %v497
  %655 = vmatprep.subr.mxu0 0.0
  %656 = vmatpush1.msra.mxu0 %v498
  %657 = vmatprep.subr.mxu0 0.0
  %658 = vmatpush1.msra.mxu0 %v499
  %659 = vmatprep.subr.mxu0 0.0
  %660 = vmatpush1.msra.mxu0 %v527
  %661 = vmatprep.subr.mxu0 0.0
  %662 = vmatpush1.msra.mxu0 %v529
  %663 = vmatprep.subr.mxu0 0.0
  %664 = vmatpush1.msra.mxu0 %v531
  %665 = vmatprep.subr.mxu0 0.0
  %666 = vmatpush1.msra.mxu0 %v533
  %667 = vmatprep.subr.mxu0 0.0
  %668 = vmatpush1.msra.mxu0 %v535
  %669 = vmatprep.subr.mxu0 0.0
  %670 = vmatpush1.msra.mxu0 %v537
  %671 = vmatprep.subr.mxu0 0.0
  %672 = vmatpush1.msra.mxu0 %v539
  %673 = vmatprep.subr.mxu0 0.0
  %674 = vmatpush1.msra.mxu0 0.0
  %675 = vmatprep.subr.mxu0 0.0
  %676 = vmatpush1.msra.mxu0 0.0
  %677 = vmatprep.subr.mxu0 0.0
  %678 = vmatpush1.msra.mxu0 0.0
  %679 = vmatprep.subr.mxu0 0.0
  %680 = vmatpush1.msra.mxu0 0.0
  %681 = vmatprep.subr.mxu0 0.0
  %682 = vmatpush1.msra.mxu0 0.0
  %683 = vmatprep.subr.mxu0 0.0
  %684 = vmatpush1.msra.mxu0 0.0
  %685 = vmatprep.subr.mxu0 0.0
  %686 = vmatpush1.msra.mxu0 0.0
  %687 = vmatprep.subr.mxu0 0.0
  %688 = vmatpush1.msra.mxu0 0.0
  %689 = vmatprep.subr.mxu0 0.0
  %690 = vmatpush1.msra.mxu0 0.0
  %691 = vmatprep.subr.mxu0 0.0
  %692 = vmatpush1.msra.mxu0 0.0
  %693 = vmatprep.subr.mxu0 0.0
  %694 = vmatpush1.msra.mxu0 0.0
  %695 = vmatprep.subr.mxu0 0.0
  %696 = vmatpush1.msra.mxu0 0.0
  %697 = vmatprep.subr.mxu0 0.0
  %698 = vmatpush1.msra.mxu0 0.0
  %699 = vmatprep.subr.mxu0 0.0
  %700 = vmatpush1.msra.mxu0 0.0
  %701 = vmatprep.subr.mxu0 0.0
  %702 = vmatpush1.msra.mxu0 0.0
  %703 = vmatprep.subr.mxu0 0.0
  %704 = vmatpush1.msra.mxu0 0.0
  %705 = vmatprep.subr.mxu0 0.0
  %706 = vmatpush1.msra.mxu0 0.0
  %707 = vmatprep.subr.mxu0 0.0
  %708 = vmatpush1.msra.mxu0 0.0
  %709 = vmatprep.mubr.f32.mxu0 0.0
  %710 = vmatmul.mubr.f32.gmra.mrb[0].mxu0 %v607
  %v711 = vpop.f32.mrb[0].mxu0
  %v712 = vadd.f32 %v543, %v711
  %v713 = vpop.f32.mrb[0].mxu0
  %714 = vmatprep.mubr.f32.mxu0 0.0
  %715 = vmatmul.mubr.f32.gmra.mrb[0].mxu0 %v610
  %v716 = vpop.f32.mrb[0].mxu0
  %v717 = vadd.f32 %v548, %v716
  %v718 = vpop.f32.mrb[0].mxu0
  %719 = vmatprep.mubr.f32.mxu0 0.0
  %720 = vmatmul.mubr.f32.gmra.mrb[0].mxu0 %v613
  %v721 = vpop.f32.mrb[0].mxu0
  %v722 = vadd.f32 %v553, %v721
  %v723 = vpop.f32.mrb[0].mxu0
  %724 = vmatprep.mubr.f32.mxu0 0.0
  %725 = vmatmul.mubr.f32.gmra.mrb[0].mxu0 %v616
  %v726 = vpop.f32.mrb[0].mxu0
  %v727 = vadd.f32 %v558, %v726
  %v728 = vpop.f32.mrb[0].mxu0
  %729 = vmatprep.mubr.f32.mxu0 0.0
  %730 = vmatmul.mubr.f32.gmra.mrb[0].mxu0 %v619
  %v731 = vpop.f32.mrb[0].mxu0
  %v732 = vadd.f32 %v563, %v731
  %v733 = vpop.f32.mrb[0].mxu0
  %734 = vmatprep.mubr.f32.mxu0 0.0
  %735 = vmatmul.mubr.f32.gmra.mrb[0].mxu0 %v622
  %v736 = vpop.f32.mrb[0].mxu0
  %v737 = vadd.f32 %v568, %v736
  %v738 = vpop.f32.mrb[0].mxu0
  %739 = vmatprep.mubr.f32.mxu0 0.0
  %740 = vmatmul.mubr.f32.gmra.mrb[0].mxu0 %v625
  %v741 = vpop.f32.mrb[0].mxu0
  %v742 = vadd.f32 %v573, %v741
  %v743 = vpop.f32.mrb[0].mxu0
  %744 = vmatprep.mubr.f32.mxu0 0.0
  %745 = vmatmul.mubr.f32.gmra.mrb[0].mxu0 %v628
  %v746 = vpop.f32.mrb[0].mxu0
  %v747 = vadd.f32 %v578, %v746
  %v748 = vpop.f32.mrb[0].mxu0
  %749 = vmatprep.mubr.f32.mxu0 0.0
  %750 = vmatmul.mubr.f32.gmra.mrb[0].mxu0 %v631
  %v751 = vpop.f32.mrb[0].mxu0
  %v752 = vadd.f32 %v583, %v751
  %v753 = vpop.f32.mrb[0].mxu0
  %754 = vmatprep.mubr.f32.mxu0 0.0
  %755 = vmatmul.mubr.f32.gmra.mrb[0].mxu0 %v634
  %v756 = vpop.f32.mrb[0].mxu0
  %v757 = vadd.f32 %v588, %v756
  %v758 = vpop.f32.mrb[0].mxu0
  %759 = vmatprep.mubr.f32.mxu0 0.0
  %760 = vmatmul.mubr.f32.gmra.mrb[0].mxu0 %v637
  %v761 = vpop.f32.mrb[0].mxu0
  %v762 = vadd.f32 %v593, %v761
  %v763 = vpop.f32.mrb[0].mxu0
  %764 = vmatprep.mubr.f32.mxu0 0.0
  %765 = vmatmul.mubr.f32.gmra.mrb[0].mxu0 %v640
  %v766 = vpop.f32.mrb[0].mxu0
  %v767 = vadd.f32 %v598, %v766
  %v768 = vpop.f32.mrb[0].mxu0
  %769 = vmatprep.mubr.f32.mxu0 0.0
  %770 = vmatmul.mubr.f32.gmra.mrb[0].mxu0 %v643
  %v771 = vpop.f32.mrb[0].mxu0
  %v772 = vadd.f32 %v603, %v771
  %v773 = vpop.f32.mrb[0].mxu0
  %774 = vdwg.mxu0
  %vm775 = vcmp.ge.f32.partialorder %v712, 0.0
  %vm776 = vcmp.ge.f32.partialorder %v717, 0.0
  %vm777 = vcmp.ge.f32.partialorder %v722, 0.0
  %vm778 = vcmp.ge.f32.partialorder %v727, 0.0
  %vm779 = vcmp.ge.f32.partialorder %v732, 0.0
  %vm780 = vcmp.ge.f32.partialorder %v737, 0.0
  %vm781 = vcmp.ge.f32.partialorder %v742, 0.0
  %vm782 = vcmp.ge.f32.partialorder %v747, 0.0
  %vm783 = vcmp.ge.f32.partialorder %v752, 0.0
  %vm784 = vcmp.ge.f32.partialorder %v757, 0.0
  %vm785 = vcmp.ge.f32.partialorder %v762, 0.0
  %vm786 = vcmp.ge.f32.partialorder %v767, 0.0
  %vm787 = vcmp.ge.f32.partialorder %v772, 0.0
  %v788 = vmul.f32 %v712, 0.01
  %v789 = vmul.f32 %v717, 0.01
  %v790 = vmul.f32 %v722, 0.01
  %v791 = vmul.f32 %v727, 0.01
  %v792 = vmul.f32 %v732, 0.01
  %v793 = vmul.f32 %v737, 0.01
  %v794 = vmul.f32 %v742, 0.01
  %v795 = vmul.f32 %v747, 0.01
  %v796 = vmul.f32 %v752, 0.01
  %v797 = vmul.f32 %v757, 0.01
  %v798 = vmul.f32 %v762, 0.01
  %v799 = vmul.f32 %v767, 0.01
  %v800 = vmul.f32 %v772, 0.01
  %v801 = vsel %vm775, %v712, %v788
  %v802 = vsel %vm776, %v717, %v789
  %v803 = vsel %vm777, %v722, %v790
  %v804 = vsel %vm778, %v727, %v791
  %v805 = vsel %vm779, %v732, %v792
  %v806 = vsel %vm780, %v737, %v793
  %v807 = vsel %vm781, %v742, %v794
  %v808 = vsel %vm782, %v747, %v795
  %v809 = vsel %vm783, %v752, %v796
  %v810 = vsel %vm784, %v757, %v797
  %v811 = vsel %vm785, %v762, %v798
  %v812 = vsel %vm786, %v767, %v799
  %v813 = vsel %vm787, %v772, %v800
  %v814 = vld [vmem:[%s9] sm:$0xff]
  %v815 = vld [vmem:[%s9 + $0x8] sm:$0xff]
  %v816 = vld [vmem:[%s9 + $0x10] sm:$0xff]
  %v817 = vld [vmem:[%s9 + $0x18] sm:$0xff]
  %v818 = vld [vmem:[%s9 + $0x20] sm:$0xff]
  %v819 = vld [vmem:[%s9 + $0x28] sm:$0xff]
  %v820 = vld [vmem:[%s9 + $0x30] sm:$0xff]
  %v821 = vld [vmem:[%s9 + $0x38] sm:$0xff]
  %v822 = vld [vmem:[%s9 + $0x40] sm:$0xff]
  %v823 = vld [vmem:[%s9 + $0x48] sm:$0xff]
  %v824 = vld [vmem:[%s9 + $0x50] sm:$0xff]
  %v825 = vld [vmem:[%s9 + $0x58] sm:$0xff]
  %v826 = vld [vmem:[%s9 + $0x60] sm:$0xff]
  %v827 = vld [vmem:[%s9 + $0x68] sm:$0xff]
  %v828 = vld [vmem:[%s10] sm:$0xff]
  %v829 = vld [vmem:[%s10 + $0x8] sm:$0xff]
  %v830 = vld [vmem:[%s10 + $0x10] sm:$0xff]
  %v831 = vld [vmem:[%s10 + $0x18] sm:$0xff]
  %v832 = vld [vmem:[%s10 + $0x20] sm:$0xff]
  %v833 = vld [vmem:[%s10 + $0x28] sm:$0xff]
  %v834 = vld [vmem:[%s10 + $0x30] sm:$0xff]
  %835 = vrot.lane.b32.xlu0 %v801, 120
  %v836 = vpop.permute.xlu0 %835
  %837 = vrot.lane.b32.xlu0 %v802, 120
  %v838 = vpop.permute.xlu0 %837
  %839 = vrot.lane.b32.xlu0 %v803, 120
  %v840 = vpop.permute.xlu0 %839
  %841 = vrot.lane.b32.xlu0 %v804, 120
  %v842 = vpop.permute.xlu0 %841
  %843 = vrot.lane.b32.xlu0 %v805, 120
  %v844 = vpop.permute.xlu0 %843
  %845 = vrot.lane.b32.xlu0 %v806, 120
  %v846 = vpop.permute.xlu0 %845
  %847 = vrot.lane.b32.xlu0 %v807, 120
  %v848 = vpop.permute.xlu0 %847
  %849 = vrot.lane.b32.xlu0 %v808, 120
  %v850 = vpop.permute.xlu0 %849
  %851 = vrot.lane.b32.xlu0 %v809, 120
  %v852 = vpop.permute.xlu0 %851
  %853 = vrot.lane.b32.xlu0 %v810, 120
  %v854 = vpop.permute.xlu0 %853
  %855 = vrot.lane.b32.xlu0 %v811, 120
  %v856 = vpop.permute.xlu0 %855
  %857 = vrot.lane.b32.xlu0 %v812, 120
  %v858 = vpop.permute.xlu0 %857
  %859 = vrot.lane.b32.xlu0 %v813, 120
  %v860 = vpop.permute.xlu0 %859
  %862 = vset.pattern.permute.xlu0 0
  %863 = vperm.xlu0 %862, %v828
  %v864 = vpop.permute.xlu0 %863
  %867 = vset.pattern.permute.xlu0 0
  %868 = vperm.xlu0 %867, %v829
  %v869 = vpop.permute.xlu0 %868
  %872 = vset.pattern.permute.xlu0 0
  %873 = vperm.xlu0 %872, %v830
  %v874 = vpop.permute.xlu0 %873
  %877 = vset.pattern.permute.xlu0 0
  %878 = vperm.xlu0 %877, %v831
  %v879 = vpop.permute.xlu0 %878
  %882 = vset.pattern.permute.xlu0 0
  %883 = vperm.xlu0 %882, %v832
  %v884 = vpop.permute.xlu0 %883
  %887 = vset.pattern.permute.xlu0 0
  %888 = vperm.xlu0 %887, %v833
  %v889 = vpop.permute.xlu0 %888
  %892 = vset.pattern.permute.xlu0 0
  %893 = vperm.xlu0 %892, %v834
  %v894 = vpop.permute.xlu0 %893
  %vm896 = vcmask 654336
  %v898 = vsel %vm896, %v815, 0
  %v901 = vsel %vm896, %v817, 0
  %v904 = vsel %vm896, %v819, 0
  %v907 = vsel %vm896, %v821, 0
  %v910 = vsel %vm896, %v823, 0
  %v913 = vsel %vm896, %v825, 0
  %v916 = vsel %vm896, %v827, 0
  %918 = vmatprep.subr.mxu0 0.0
  %919 = vmatpush1.msra.mxu0 %v801
  %920 = vmatprep.subr.mxu0 0.0
  %921 = vmatpush1.msra.mxu0 %v802
  %922 = vmatprep.subr.mxu0 0.0
  %923 = vmatpush1.msra.mxu0 %v803
  %924 = vmatprep.subr.mxu0 0.0
  %925 = vmatpush1.msra.mxu0 %v804
  %926 = vmatprep.subr.mxu0 0.0
  %927 = vmatpush1.msra.mxu0 %v805
  %928 = vmatprep.subr.mxu0 0.0
  %929 = vmatpush1.msra.mxu0 %v806
  %930 = vmatprep.subr.mxu0 0.0
  %931 = vmatpush1.msra.mxu0 %v807
  %932 = vmatprep.subr.mxu0 0.0
  %933 = vmatpush1.msra.mxu0 %v808
  %934 = vmatprep.subr.mxu0 0.0
  %935 = vmatpush1.msra.mxu0 %v809
  %936 = vmatprep.subr.mxu0 0.0
  %937 = vmatpush1.msra.mxu0 %v810
  %938 = vmatprep.subr.mxu0 0.0
  %939 = vmatpush1.msra.mxu0 %v811
  %940 = vmatprep.subr.mxu0 0.0
  %941 = vmatpush1.msra.mxu0 %v812
  %942 = vmatprep.subr.mxu0 0.0
  %943 = vmatpush1.msra.mxu0 %v813
  %944 = vmatprep.subr.mxu0 0.0
  %945 = vmatpush1.msra.mxu0 %v836
  %946 = vmatprep.subr.mxu0 0.0
  %947 = vmatpush1.msra.mxu0 %v838
  %948 = vmatprep.subr.mxu0 0.0
  %949 = vmatpush1.msra.mxu0 %v840
  %950 = vmatprep.subr.mxu0 0.0
  %951 = vmatpush1.msra.mxu0 %v842
  %952 = vmatprep.subr.mxu0 0.0
  %953 = vmatpush1.msra.mxu0 %v844
  %954 = vmatprep.subr.mxu0 0.0
  %955 = vmatpush1.msra.mxu0 %v846
  %956 = vmatprep.subr.mxu0 0.0
  %957 = vmatpush1.msra.mxu0 %v848
  %958 = vmatprep.subr.mxu0 0.0
  %959 = vmatpush1.msra.mxu0 %v850
  %960 = vmatprep.subr.mxu0 0.0
  %961 = vmatpush1.msra.mxu0 %v852
  %962 = vmatprep.subr.mxu0 0.0
  %963 = vmatpush1.msra.mxu0 %v854
  %964 = vmatprep.subr.mxu0 0.0
  %965 = vmatpush1.msra.mxu0 %v856
  %966 = vmatprep.subr.mxu0 0.0
  %967 = vmatpush1.msra.mxu0 %v858
  %968 = vmatprep.subr.mxu0 0.0
  %969 = vmatpush1.msra.mxu0 %v860
  %970 = vmatprep.subr.mxu0 0.0
  %971 = vmatpush1.msra.mxu0 0.0
  %972 = vmatprep.subr.mxu0 0.0
  %973 = vmatpush1.msra.mxu0 0.0
  %974 = vmatprep.subr.mxu0 0.0
  %975 = vmatpush1.msra.mxu0 0.0
  %976 = vmatprep.subr.mxu0 0.0
  %977 = vmatpush1.msra.mxu0 0.0
  %978 = vmatprep.subr.mxu0 0.0
  %979 = vmatpush1.msra.mxu0 0.0
  %980 = vmatprep.subr.mxu0 0.0
  %981 = vmatpush1.msra.mxu0 0.0
  %982 = vmatprep.mubr.f32.mxu0 %v898
  %983 = vmatmul.mubr.f32.gmra.mrb[0].mxu0 %v814
  %v984 = vpop.f32.mrb[0].mxu0
  %v985 = vadd.f32 %v864, %v984
  %v986 = vpop.f32.mrb[0].mxu0
  %987 = vmatprep.mubr.f32.mxu0 %v901
  %988 = vmatmul.mubr.f32.gmra.mrb[0].mxu0 %v816
  %v989 = vpop.f32.mrb[0].mxu0
  %v990 = vadd.f32 %v869, %v989
  %v991 = vpop.f32.mrb[0].mxu0
  %992 = vmatprep.mubr.f32.mxu0 %v904
  %993 = vmatmul.mubr.f32.gmra.mrb[0].mxu0 %v818
  %v994 = vpop.f32.mrb[0].mxu0
  %v995 = vadd.f32 %v874, %v994
  %v996 = vpop.f32.mrb[0].mxu0
  %997 = vmatprep.mubr.f32.mxu0 %v907
  %998 = vmatmul.mubr.f32.gmra.mrb[0].mxu0 %v820
  %v999 = vpop.f32.mrb[0].mxu0
  %v1000 = vadd.f32 %v879, %v999
  %v1001 = vpop.f32.mrb[0].mxu0
  %1002 = vmatprep.mubr.f32.mxu0 %v910
  %1003 = vmatmul.mubr.f32.gmra.mrb[0].mxu0 %v822
  %v1004 = vpop.f32.mrb[0].mxu0
  %v1005 = vadd.f32 %v884, %v1004
  %v1006 = vpop.f32.mrb[0].mxu0
  %1007 = vmatprep.mubr.f32.mxu0 %v913
  %1008 = vmatmul.mubr.f32.gmra.mrb[0].mxu0 %v824
  %v1009 = vpop.f32.mrb[0].mxu0
  %v1010 = vadd.f32 %v889, %v1009
  %v1011 = vpop.f32.mrb[0].mxu0
  %1012 = vmatprep.mubr.f32.mxu0 %v916
  %1013 = vmatmul.mubr.f32.gmra.mrb[0].mxu0 %v826
  %v1014 = vpop.f32.mrb[0].mxu0
  %v1015 = vadd.f32 %v894, %v1014
  %v1016 = vpop.f32.mrb[0].mxu0
  %1017 = vdwg.mxu0
  %vm1018 = vcmp.ge.f32.partialorder %v985, 0.0
  %vm1019 = vcmp.ge.f32.partialorder %v990, 0.0
  %vm1020 = vcmp.ge.f32.partialorder %v995, 0.0
  %vm1021 = vcmp.ge.f32.partialorder %v1000, 0.0
  %vm1022 = vcmp.ge.f32.partialorder %v1005, 0.0
  %vm1023 = vcmp.ge.f32.partialorder %v1010, 0.0
  %vm1024 = vcmp.ge.f32.partialorder %v1015, 0.0
  %v1025 = vmul.f32 %v985, 0.01
  %v1026 = vmul.f32 %v990, 0.01
  %v1027 = vmul.f32 %v995, 0.01
  %v1028 = vmul.f32 %v1000, 0.01
  %v1029 = vmul.f32 %v1005, 0.01
  %v1030 = vmul.f32 %v1010, 0.01
  %v1031 = vmul.f32 %v1015, 0.01
  %v1032 = vsel %vm1018, %v985, %v1025
  %v1033 = vsel %vm1019, %v990, %v1026
  %v1034 = vsel %vm1020, %v995, %v1027
  %v1035 = vsel %vm1021, %v1000, %v1028
  %v1036 = vsel %vm1022, %v1005, %v1029
  %v1037 = vsel %vm1023, %v1010, %v1030
  %v1038 = vsel %vm1024, %v1015, %v1031
  %v1039 = vld [vmem:[%s11] sm:$0xff]
  %v1040 = vld [vmem:[%s11 + $0x8] sm:$0xff]
  %v1041 = vld [vmem:[%s11 + $0x10] sm:$0xff]
  %v1042 = vld [vmem:[%s11 + $0x18] sm:$0xff]
  %v1043 = vld [vmem:[%s12] sm:$0xff]
  %v1044 = vld [vmem:[%s12 + $0x8] sm:$0xff]
  %v1045 = vld [vmem:[%s12 + $0x10] sm:$0xff]
  %v1046 = vld [vmem:[%s12 + $0x18] sm:$0xff]
  %1047 = vrot.lane.b32.xlu0 %v1032, 120
  %v1048 = vpop.permute.xlu0 %1047
  %1049 = vrot.lane.b32.xlu0 %v1033, 120
  %v1050 = vpop.permute.xlu0 %1049
  %1051 = vrot.lane.b32.xlu0 %v1034, 120
  %v1052 = vpop.permute.xlu0 %1051
  %1053 = vrot.lane.b32.xlu0 %v1035, 120
  %v1054 = vpop.permute.xlu0 %1053
  %1055 = vrot.lane.b32.xlu0 %v1036, 120
  %v1056 = vpop.permute.xlu0 %1055
  %1057 = vrot.lane.b32.xlu0 %v1037, 120
  %v1058 = vpop.permute.xlu0 %1057
  %1059 = vrot.lane.b32.xlu0 %v1038, 120
  %v1060 = vpop.permute.xlu0 %1059
  %1062 = vset.pattern.permute.xlu0 0
  %1063 = vperm.xlu0 %1062, %v1043
  %v1064 = vpop.permute.xlu0 %1063
  %1067 = vset.pattern.permute.xlu0 0
  %1068 = vperm.xlu0 %1067, %v1044
  %v1069 = vpop.permute.xlu0 %1068
  %1072 = vset.pattern.permute.xlu0 0
  %1073 = vperm.xlu0 %1072, %v1045
  %v1074 = vpop.permute.xlu0 %1073
  %1077 = vset.pattern.permute.xlu0 0
  %1078 = vperm.xlu0 %1077, %v1046
  %v1079 = vpop.permute.xlu0 %1078
  %v1082 = vsel %vm605, %v1039, 0
  %v1085 = vsel %vm605, %v1040, 0
  %v1088 = vsel %vm605, %v1041, 0
  %v1091 = vsel %vm605, %v1042, 0
  %1093 = vmatprep.subr.mxu0 0.0
  %1094 = vmatpush1.msra.mxu0 %v1032
  %1095 = vmatprep.subr.mxu0 0.0
  %1096 = vmatpush1.msra.mxu0 %v1033
  %1097 = vmatprep.subr.mxu0 0.0
  %1098 = vmatpush1.msra.mxu0 %v1034
  %1099 = vmatprep.subr.mxu0 0.0
  %1100 = vmatpush1.msra.mxu0 %v1035
  %1101 = vmatprep.subr.mxu0 0.0
  %1102 = vmatpush1.msra.mxu0 %v1036
  %1103 = vmatprep.subr.mxu0 0.0
  %1104 = vmatpush1.msra.mxu0 %v1037
  %1105 = vmatprep.subr.mxu0 0.0
  %1106 = vmatpush1.msra.mxu0 %v1038
  %1107 = vmatprep.subr.mxu0 0.0
  %1108 = vmatpush1.msra.mxu0 %v1048
  %1109 = vmatprep.subr.mxu0 0.0
  %1110 = vmatpush1.msra.mxu0 %v1050
  %1111 = vmatprep.subr.mxu0 0.0
  %1112 = vmatpush1.msra.mxu0 %v1052
  %1113 = vmatprep.subr.mxu0 0.0
  %1114 = vmatpush1.msra.mxu0 %v1054
  %1115 = vmatprep.subr.mxu0 0.0
  %1116 = vmatpush1.msra.mxu0 %v1056
  %1117 = vmatprep.subr.mxu0 0.0
  %1118 = vmatpush1.msra.mxu0 %v1058
  %1119 = vmatprep.subr.mxu0 0.0
  %1120 = vmatpush1.msra.mxu0 %v1060
  %1121 = vmatprep.subr.mxu0 0.0
  %1122 = vmatpush1.msra.mxu0 0.0
  %1123 = vmatprep.subr.mxu0 0.0
  %1124 = vmatpush1.msra.mxu0 0.0
  %1125 = vmatprep.subr.mxu0 0.0
  %1126 = vmatpush1.msra.mxu0 0.0
  %1127 = vmatprep.subr.mxu0 0.0
  %1128 = vmatpush1.msra.mxu0 0.0
  %1129 = vmatprep.subr.mxu0 0.0
  %1130 = vmatpush1.msra.mxu0 0.0
  %1131 = vmatprep.subr.mxu0 0.0
  %1132 = vmatpush1.msra.mxu0 0.0
  %1133 = vmatprep.subr.mxu0 0.0
  %1134 = vmatpush1.msra.mxu0 0.0
  %1135 = vmatprep.subr.mxu0 0.0
  %1136 = vmatpush1.msra.mxu0 0.0
  %1137 = vmatprep.subr.mxu0 0.0
  %1138 = vmatpush1.msra.mxu0 0.0
  %1139 = vmatprep.subr.mxu0 0.0
  %1140 = vmatpush1.msra.mxu0 0.0
  %1141 = vmatprep.subr.mxu0 0.0
  %1142 = vmatpush1.msra.mxu0 0.0
  %1143 = vmatprep.subr.mxu0 0.0
  %1144 = vmatpush1.msra.mxu0 0.0
  %1145 = vmatprep.subr.mxu0 0.0
  %1146 = vmatpush1.msra.mxu0 0.0
  %1147 = vmatprep.subr.mxu0 0.0
  %1148 = vmatpush1.msra.mxu0 0.0
  %1149 = vmatprep.subr.mxu0 0.0
  %1150 = vmatpush1.msra.mxu0 0.0
  %1151 = vmatprep.subr.mxu0 0.0
  %1152 = vmatpush1.msra.mxu0 0.0
  %1153 = vmatprep.subr.mxu0 0.0
  %1154 = vmatpush1.msra.mxu0 0.0
  %1155 = vmatprep.subr.mxu0 0.0
  %1156 = vmatpush1.msra.mxu0 0.0
  %1157 = vmatprep.mubr.f32.mxu0 0.0
  %1158 = vmatmul.mubr.f32.gmra.mrb[0].mxu0 %v1082
  %v1159 = vpop.f32.mrb[0].mxu0
  %v1160 = vadd.f32 %v1064, %v1159
  %v1161 = vpop.f32.mrb[0].mxu0
  %1162 = vmatprep.mubr.f32.mxu0 0.0
  %1163 = vmatmul.mubr.f32.gmra.mrb[0].mxu0 %v1085
  %v1164 = vpop.f32.mrb[0].mxu0
  %v1165 = vadd.f32 %v1069, %v1164
  %v1166 = vpop.f32.mrb[0].mxu0
  %1167 = vmatprep.mubr.f32.mxu0 0.0
  %1168 = vmatmul.mubr.f32.gmra.mrb[0].mxu0 %v1088
  %v1169 = vpop.f32.mrb[0].mxu0
  %v1170 = vadd.f32 %v1074, %v1169
  %v1171 = vpop.f32.mrb[0].mxu0
  %1172 = vmatprep.mubr.f32.mxu0 0.0
  %1173 = vmatmul.mubr.f32.gmra.mrb[0].mxu0 %v1091
  %v1174 = vpop.f32.mrb[0].mxu0
  %v1175 = vadd.f32 %v1079, %v1174
  %v1176 = vpop.f32.mrb[0].mxu0
  %1177 = vdwg.mxu0
  %vm1178 = vcmp.ge.f32.partialorder %v1160, 0.0
  %vm1179 = vcmp.ge.f32.partialorder %v1165, 0.0
  %vm1180 = vcmp.ge.f32.partialorder %v1170, 0.0
  %vm1181 = vcmp.ge.f32.partialorder %v1175, 0.0
  %v1182 = vmul.f32 %v1160, 0.01
  %v1183 = vmul.f32 %v1165, 0.01
  %v1184 = vmul.f32 %v1170, 0.01
  %v1185 = vmul.f32 %v1175, 0.01
  %v1186 = vsel %vm1178, %v1160, %v1182
  %v1187 = vsel %vm1179, %v1165, %v1183
  %v1188 = vsel %vm1180, %v1170, %v1184
  %v1189 = vsel %vm1181, %v1175, %v1185
  %v1190 = vld [vmem:[%s13] sm:$0xff]
  %v1191 = vld [vmem:[%s14] sm:$0xff]
  %1192 = vrot.lane.b32.xlu0 %v1186, 120
  %v1193 = vpop.permute.xlu0 %1192
  %1194 = vrot.lane.b32.xlu0 %v1187, 120
  %v1195 = vpop.permute.xlu0 %1194
  %1196 = vrot.lane.b32.xlu0 %v1188, 120
  %v1197 = vpop.permute.xlu0 %1196
  %1198 = vrot.lane.b32.xlu0 %v1189, 120
  %v1199 = vpop.permute.xlu0 %1198
  %1201 = vset.pattern.permute.xlu0 0
  %1202 = vperm.xlu0 %1201, %v1191
  %v1203 = vpop.permute.xlu0 %1202
  %v1206 = vsel %vm357, %v1190, 0
  %1208 = vmatprep.subr.mxu0 0.0
  %1209 = vmatpush1.msra.mxu0 %v1186
  %1210 = vmatprep.subr.mxu0 0.0
  %1211 = vmatpush1.msra.mxu0 %v1187
  %1212 = vmatprep.subr.mxu0 0.0
  %1213 = vmatpush1.msra.mxu0 %v1188
  %1214 = vmatprep.subr.mxu0 0.0
  %1215 = vmatpush1.msra.mxu0 %v1189
  %1216 = vmatprep.subr.mxu0 0.0
  %1217 = vmatpush1.msra.mxu0 %v1193
  %1218 = vmatprep.subr.mxu0 0.0
  %1219 = vmatpush1.msra.mxu0 %v1195
  %1220 = vmatprep.subr.mxu0 0.0
  %1221 = vmatpush1.msra.mxu0 %v1197
  %1222 = vmatprep.subr.mxu0 0.0
  %1223 = vmatpush1.msra.mxu0 %v1199
  %1224 = vmatprep.subr.mxu0 0.0
  %1225 = vmatpush1.msra.mxu0 0.0
  %1226 = vmatprep.subr.mxu0 0.0
  %1227 = vmatpush1.msra.mxu0 0.0
  %1228 = vmatprep.subr.mxu0 0.0
  %1229 = vmatpush1.msra.mxu0 0.0
  %1230 = vmatprep.subr.mxu0 0.0
  %1231 = vmatpush1.msra.mxu0 0.0
  %1232 = vmatprep.subr.mxu0 0.0
  %1233 = vmatpush1.msra.mxu0 0.0
  %1234 = vmatprep.subr.mxu0 0.0
  %1235 = vmatpush1.msra.mxu0 0.0
  %1236 = vmatprep.subr.mxu0 0.0
  %1237 = vmatpush1.msra.mxu0 0.0
  %1238 = vmatprep.subr.mxu0 0.0
  %1239 = vmatpush1.msra.mxu0 0.0
  %1240 = vmatprep.subr.mxu0 0.0
  %1241 = vmatpush1.msra.mxu0 0.0
  %1242 = vmatprep.subr.mxu0 0.0
  %1243 = vmatpush1.msra.mxu0 0.0
  %1244 = vmatprep.subr.mxu0 0.0
  %1245 = vmatpush1.msra.mxu0 0.0
  %1246 = vmatprep.subr.mxu0 0.0
  %1247 = vmatpush1.msra.mxu0 0.0
  %1248 = vmatprep.subr.mxu0 0.0
  %1249 = vmatpush1.msra.mxu0 0.0
  %1250 = vmatprep.subr.mxu0 0.0
  %1251 = vmatpush1.msra.mxu0 0.0
  %1252 = vmatprep.subr.mxu0 0.0
  %1253 = vmatpush1.msra.mxu0 0.0
  %1254 = vmatprep.subr.mxu0 0.0
  %1255 = vmatpush1.msra.mxu0 0.0
  %1256 = vmatprep.subr.mxu0 0.0
  %1257 = vmatpush1.msra.mxu0 0.0
  %1258 = vmatprep.subr.mxu0 0.0
  %1259 = vmatpush1.msra.mxu0 0.0
  %1260 = vmatprep.subr.mxu0 0.0
  %1261 = vmatpush1.msra.mxu0 0.0
  %1262 = vmatprep.subr.mxu0 0.0
  %1263 = vmatpush1.msra.mxu0 0.0
  %1264 = vmatprep.subr.mxu0 0.0
  %1265 = vmatpush1.msra.mxu0 0.0
  %1266 = vmatprep.subr.mxu0 0.0
  %1267 = vmatpush1.msra.mxu0 0.0
  %1268 = vmatprep.subr.mxu0 0.0
  %1269 = vmatpush1.msra.mxu0 0.0
  %1270 = vmatprep.subr.mxu0 0.0
  %1271 = vmatpush1.msra.mxu0 0.0
  %1272 = vmatprep.mubr.f32.mxu0 0.0
  %1273 = vmatmul.mubr.f32.gmra.mrb[0].mxu0 %v1206
  %v1274 = vpop.f32.mrb[0].mxu0
  %v1275 = vadd.f32 %v1203, %v1274
  %v1276 = vpop.f32.mrb[0].mxu0
  %1277 = vdwg.mxu0
  %v1278 = vld [vmem:[%s15] sm:$0xff]
  %v1279 = vmul.f32 %v1278, %v1275
  %1280 = vst [vmem:[%s16] sm:$0xff] %v1279
  // Predicated region
  $region66: #{ti_wf_1d_forward.1} parent=0 // pred_check
    _
  $region67: #{ti_wf_1d_forward.1} parent=0 // pred_check_branch
    %1282 = sbr.rel (0) target = $region69
  $region68: #{ti_wf_1d_forward.1} parent=0 // pred_region
    _
  $region69: #{ti_wf_1d_forward.1} parent=0 // pred_fallthru
    _
  // Predicated region
  $region70: #{ti_wf_1d_forward.1} parent=0 // pred_check
    _
  $region71: #{ti_wf_1d_forward.1} parent=0 // pred_check_branch
    %1284 = sbr.rel (0) target = $region73
  $region72: #{ti_wf_1d_forward.1} parent=0 // pred_region
    _
  $region73: #{ti_wf_1d_forward.1} parent=0 // pred_fallthru
    _

</llo_original>
